<compile_context>
chip_gen: v7x
topology: tpu7x:2x2x1
jax: 0.10.0
libtpu: 0.0.40
codegen_flags: <defaults>
</compile_context>

<pallas_src>
import jax
import jax.numpy as jnp
import numpy as np
from jax import lax
from jax.experimental import pallas as pl
from jax.experimental.pallas import tpu as pltpu

BN_EPS = 1e-5


def _cdiv(a, b):
    return -(-a // b)


def _scratch_geom(H, W, pad):
    """Halo-padded depthwise scratch geometry with sublane-aligned interior."""
    if pad == 0:
        return H, W, 0
    LP = 8 * _cdiv(pad, 8)        # left halo rounded up -> interior store at a
    return H + 2 * pad, LP + W + pad, LP          # sublane-aligned column


# ----------------------------------------------------------------------------
# Pallas kernel
# ----------------------------------------------------------------------------
def _make_kernel(nb, H, W, Cin, hidden, oup, K, Hk, Wk,
                 has_expand, use_res, pack_in, pack_out, s2_in_kernel):
    pad = (K - 1) // 2
    Hp, Wp, LP = _scratch_geom(H, W, pad)
    P = nb * H * W                 # full-resolution pixels per grid step
    Po = nb * Hk * Wk              # output pixels per grid step

    def body(x_ref, w1_ref, b1_ref, dw_ref, b2_ref, w2_ref, b3_ref,
             o_ref, pad_ref):
        # ---- input in compute layout (pixels, Cin) ----
        x_c = x_ref[...].reshape(P, Cin)

        # ---- 1x1 expand conv (MXU, bf16 operands, f32 acc) + bias + ReLU6 ----
        if has_expand:
            h1 = jnp.dot(x_c.astype(jnp.bfloat16), w1_ref[...],
                         preferred_element_type=jnp.float32)
            h1 = jnp.clip(h1 + b1_ref[...], 0.0, 6.0)
        else:
            h1 = x_c                                   # hidden == Cin

        # ---- KxK depthwise conv, stride 1 (VPU, f32), halo-padded scratch ----
        if pad > 0:
            # Zero only the halo strips the taps read.  Done every step so the
            # kernel stays correct if the "parallel" batch axis is split across
            # TensorCores (each core owns its own scratch copy).
            zrow = jnp.zeros((nb, pad, W + 2 * pad, hidden), jnp.float32)
            pad_ref[:, 0:pad, LP - pad:LP + W + pad, :] = zrow
            pad_ref[:, pad + H:Hp, LP - pad:LP + W + pad, :] = zrow
            zcol = jnp.zeros((nb, H, pad, hidden), jnp.float32)
            pad_ref[:, pad:pad + H, LP - pad:LP, :] = zcol
            pad_ref[:, pad:pad + H, LP + W:LP + W + pad, :] = zcol
        # Interior store: column offset LP is a multiple of 8 -> unmasked vst.
        pad_ref[:, pad:pad + H, LP:LP + W, :] = h1.reshape(nb, H, W, hidden)

        taps = dw_ref[...]                             # (K*K, hidden), BN folded
        acc = None
        for t in range(K * K):                         # static unroll (9 taps)
            dh, dwi = divmod(t, K)
            c0 = LP - pad + dwi
            tap = taps[t:t + 1, :].reshape(1, 1, 1, hidden)
            term = pad_ref[:, dh:dh + H, c0:c0 + W, :] * tap
            acc = term if acc is None else acc + term  # first tap inits acc

        # ---- stride handling, then bias + ReLU6 on the kept pixels only ----
        if s2_in_kernel:
            # even output rows: leading-dim split + index (addressing only)
            acc = acc.reshape(nb * Hk, 2, W, hidden)[:, 0]
            # even output cols: fold column pairs into lanes, keep first half
            acc = acc.reshape(Po, 2 * hidden)[:, :hidden]
        else:
            acc = acc.reshape(Po, hidden)
        h2 = jnp.clip(acc + b2_ref[...], 0.0, 6.0)

        # ---- 1x1 project conv (MXU, bf16 operands) + bias ----
        h3 = jnp.dot(h2.astype(jnp.bfloat16), w2_ref[...],
                     preferred_element_type=jnp.float32)
        h3 = h3 + b3_ref[...]

        # ---- residual + store (lane-dense layout when pack_out) ----
        if pack_out:
            out = h3.reshape(nb, Hk, Wk * oup)
            if use_res:   # use_res => stride 1 and inp == oup, shapes match
                out = out + x_ref[...].reshape(nb, Hk, Wk * oup)
            o_ref[...] = out
        else:
            if use_res:
                h3 = h3 + x_c
            o_ref[...] = h3.reshape(nb, Hk, Wk, oup)

    if has_expand:
        def kernel(x_ref, w1_ref, b1_ref, dw_ref, b2_ref, w2_ref, b3_ref,
                   o_ref, pad_ref):
            body(x_ref, w1_ref, b1_ref, dw_ref, b2_ref, w2_ref, b3_ref,
                 o_ref, pad_ref)
    else:
        def kernel(x_ref, dw_ref, b2_ref, w2_ref, b3_ref, o_ref, pad_ref):
            body(x_ref, None, None, dw_ref, b2_ref, w2_ref, b3_ref,
                 o_ref, pad_ref)
    return kernel


# ----------------------------------------------------------------------------
# VMEM budgeting / blocking choices
# ----------------------------------------------------------------------------
def _tile_bytes(rows, cols, bpe=4):
    return _cdiv(rows, 8) * 8 * _cdiv(cols, 128) * 128 * bpe


def _vmem_need(nb, H, W, Cin, hidden, oup, K, Hk, Wk, pack_in, pack_out):
    pad = (K - 1) // 2
    Hp, Wp, _ = _scratch_geom(H, W, pad)
    P, Po = nb * H * W, nb * Hk * Wk
    x_blk = nb * (_tile_bytes(H, W * Cin) if pack_in else H * _tile_bytes(W, Cin))
    o_blk = nb * (_tile_bytes(Hk, Wk * oup) if pack_out else Hk * _tile_bytes(Wk, oup))
    scratch = nb * Hp * _tile_bytes(Wp, hidden)
    weights = (_tile_bytes(Cin, hidden, 2) + _tile_bytes(hidden, oup, 2)
               + _tile_bytes(K * K, hidden) + 2 * _tile_bytes(1, hidden)
               + _tile_bytes(1, oup))
    # Explicit in-kernel temporaries: x_c, h1, acc, h2 (+bf16 copy), h3, pack.
    temps = (_tile_bytes(P, Cin) + 2 * _tile_bytes(P, hidden)
             + _tile_bytes(Po, hidden) + _tile_bytes(Po, hidden, 2)
             + _tile_bytes(Po, oup) + o_blk)
    return 2 * (x_blk + o_blk) + 2 * weights + scratch + temps


def _vmem_limit_bytes(need):
    # Leave headroom for Mosaic-internal scratch; stay <=48 MiB so the request
    # fits v7x's 64 MiB physical VMEM unless the block genuinely needs more.
    limit = max(int(1.3 * need), 32 * 1024 * 1024)
    if limit <= 48 * 1024 * 1024:
        return limit
    # TODO(synk): H-tile the grid so large stages fit v7x instead of over-asking.
    return min(limit, 100 * 1024 * 1024)


def _pick_nb(N, H, W, Cin, hidden, oup, K, Hk, Wk, pack_in, pack_out):
    """Largest divisor of N that raises MXU M without blowing the VMEM budget."""
    best = 1
    for nb in range(1, N + 1):
        if N % nb:
            continue
        if nb > 1 and nb * H * W > 2048:
            break
        if nb > 1 and _vmem_need(nb, H, W, Cin, hidden, oup, K, Hk, Wk,
                                 pack_in, pack_out) > 40 * 1024 * 1024:
            break
        best = nb
    return best


# ----------------------------------------------------------------------------
# Parameter init (deterministic, mirrors the PyTorch module's shapes)
# ----------------------------------------------------------------------------
def init_params(key, inp, oup, expand_ratio, kernel_size=3):
    hidden = int(round(inp * expand_ratio))
    ks = jax.random.split(key, 6)

    def bn_params(k, c):
        k1, k2, k3, k4 = jax.random.split(k, 4)
        gamma = 1.0 + 0.1 * jax.random.normal(k1, (c,), jnp.float32)
        beta = 0.1 * jax.random.normal(k2, (c,), jnp.float32)
        mean = 0.1 * jax.random.normal(k3, (c,), jnp.float32)
        var = 1.0 + 0.1 * jnp.abs(jax.random.normal(k4, (c,), jnp.float32))
        return gamma, beta, mean, var

    return dict(
        w_exp=jax.random.normal(ks[0], (hidden, inp, 1, 1), jnp.float32) * 0.3,
        w_dw=jax.random.normal(ks[1], (hidden, 1, kernel_size, kernel_size),
                               jnp.float32) * 0.3,
        w_prj=jax.random.normal(ks[2], (oup, hidden, 1, 1), jnp.float32) * 0.3,
        bn1=bn_params(ks[3], hidden),
        bn2=bn_params(ks[4], hidden),
        bn3=bn_params(ks[5], oup),
    )


def _fold_bn(gamma, beta, mean, var):
    scale = gamma / jnp.sqrt(var + BN_EPS)
    bias = beta - mean * scale
    return scale[None, :], bias[None, :]          # (1, C) for broadcasting


# ----------------------------------------------------------------------------
# Wrapper — NHWC in / NHWC out (no boundary transposes)
# ----------------------------------------------------------------------------
def _forward_impl(x_nhwc, params, inp, oup, stride, expand_ratio, kernel_size,
                  level):
    K = kernel_size
    pad = (K - 1) // 2
    hidden = int(round(inp * expand_ratio))
    use_res = (stride == 1 and inp == oup)
    has_expand = expand_ratio != 1
    N, H, W, C = x_nhwc.shape
    assert C == inp and stride in (1, 2) and K % 2 == 1

    s2_in_kernel = (stride == 2 and level >= 1 and H % 2 == 0 and W % 2 == 0)
    Hk, Wk = (H // 2, W // 2) if s2_in_kernel else (H, W)
    pack_in = level >= 1 and inp < 128 and W * inp >= 128
    pack_out = level >= 1 and oup < 128 and Wk * oup >= 128

    nb = _pick_nb(N, H, W, inp, hidden, oup, K, Hk, Wk, pack_in, pack_out)
    Hp, Wp, _ = _scratch_geom(H, W, pad)

    x = x_nhwc.astype(jnp.float32)
    x_in = x.reshape(N, H, W * inp) if pack_in else x   # free contiguous reshape

    # Fold BN scales into the conv weights (weight-sized work, done once in
    # XLA), leaving only per-channel bias adds inside the kernel.
    s1, b1 = _fold_bn(*params["bn1"])
    s2, b2 = _fold_bn(*params["bn2"])
    s3, b3 = _fold_bn(*params["bn3"])
    w1 = (jnp.transpose(params["w_exp"][:, :, 0, 0], (1, 0)) * s1
          ).astype(jnp.bfloat16)                                  # (inp, hidden)
    dwk = (jnp.transpose(params["w_dw"][:, 0, :, :], (1, 2, 0))
           .reshape(K * K, hidden) * s2)                          # (K*K, hidden)
    w2 = (jnp.transpose(params["w_prj"][:, :, 0, 0], (1, 0)) * s3
          ).astype(jnp.bfloat16)                                  # (hidden, oup)

    kernel = _make_kernel(nb, H, W, inp, hidden, oup, K, Hk, Wk,
                          has_expand, use_res, pack_in, pack_out, s2_in_kernel)

    def wspec(shape):
        return pl.BlockSpec(shape, lambda n, _r=len(shape): (0,) * _r)

    if pack_in:
        x_spec = pl.BlockSpec((nb, H, W * inp), lambda n: (n, 0, 0))
    else:
        x_spec = pl.BlockSpec((nb, H, W, inp), lambda n: (n, 0, 0, 0))
    if pack_out:
        out_shape = jax.ShapeDtypeStruct((N, Hk, Wk * oup), jnp.float32)
        out_spec = pl.BlockSpec((nb, Hk, Wk * oup), lambda n: (n, 0, 0))
    else:
        out_shape = jax.ShapeDtypeStruct((N, Hk, Wk, oup), jnp.float32)
        out_spec = pl.BlockSpec((nb, Hk, Wk, oup), lambda n: (n, 0, 0, 0))

    operands = [x_in]
    in_specs = [x_spec]
    if has_expand:
        operands += [w1, b1]
        in_specs += [wspec(w1.shape), wspec(b1.shape)]
    operands += [dwk, b2, w2, b3]
    in_specs += [wspec(dwk.shape), wspec(b2.shape), wspec(w2.shape),
                 wspec(b3.shape)]

    flops = 2 * N * H * W * K * K * hidden + 2 * N * Hk * Wk * hidden * oup
    if has_expand:
        flops += 2 * N * H * W * inp * hidden
    bytes_accessed = (x.size * 4 + N * Hk * Wk * oup * 4
                      + (inp * hidden * 2 if has_expand else 0)
                      + hidden * oup * 2 + (K * K + 2) * hidden * 4 + oup * 4)

    need = _vmem_need(nb, H, W, inp, hidden, oup, K, Hk, Wk, pack_in, pack_out)

    out = pl.pallas_call(
        kernel,
        out_shape=out_shape,
        grid=(N // nb,),
        in_specs=in_specs,
        out_specs=out_spec,
        scratch_shapes=[pltpu.VMEM((nb, Hp, Wp, hidden), jnp.float32)],
        compiler_params=pltpu.CompilerParams(
            dimension_semantics=("parallel",),
            vmem_limit_bytes=_vmem_limit_bytes(need)),
        cost_estimate=pl.CostEstimate(flops=int(flops), transcendentals=0,
                                      bytes_accessed=int(bytes_accessed)),
    )(*operands)

    if pack_out:
        out = out.reshape(N, Hk, Wk, oup)              # free contiguous reshape
    if stride == 2 and not s2_in_kernel:
        out = out[:, ::2, ::2, :]                      # fallback subsampling
    return out


_LEVEL_CACHE = {}


def inverted_residual_forward(x_nhwc, params, inp, oup, stride, expand_ratio,
                              kernel_size=3):
    """NHWC in / NHWC out. BatchNorm uses running stats (inference mode)."""
    cfg = (tuple(x_nhwc.shape), str(x_nhwc.dtype), inp, oup, stride,
           expand_ratio, kernel_size)
    level = _LEVEL_CACHE.get(cfg)
    if level is not None:
        return _forward_impl(x_nhwc, params, inp, oup, stride, expand_ratio,
                             kernel_size, level)
    try:
        out = _forward_impl(x_nhwc, params, inp, oup, stride, expand_ratio,
                            kernel_size, level=1)
        jax.block_until_ready(out)
        _LEVEL_CACHE[cfg] = 1
        return out
    except Exception:
        # Defensive fallback: if Mosaic rejects the lane-packing relayouts on
        # some shape/toolchain, rerun with the conservative (unpacked) layout.
        out = _forward_impl(x_nhwc, params, inp, oup, stride, expand_ratio,
                            kernel_size, level=0)
        _LEVEL_CACHE[cfg] = 0
        return out


def inverted_residual_forward_nchw(x_nchw, params, inp, oup, stride,
                                   expand_ratio, kernel_size=3):
    """PyTorch-layout adapter (adds two transposes; prefer the NHWC entry)."""
    x = jnp.transpose(x_nchw, (0, 2, 3, 1))
    y = inverted_residual_forward(x, params, inp, oup, stride, expand_ratio,
                                  kernel_size)
    return jnp.transpose(y, (0, 3, 1, 2))


# ----------------------------------------------------------------------------
# Pure-JAX reference (eval-mode BN, f32 HIGHEST precision), NHWC in/out
# ----------------------------------------------------------------------------
def reference_forward(x_nhwc, params, inp, oup, stride, expand_ratio,
                      kernel_size=3):
    hidden = int(round(inp * expand_ratio))
    use_res = (stride == 1 and inp == oup)
    pad = (kernel_size - 1) // 2
    x = x_nhwc.astype(jnp.float32)

    def bn(y, bnp):
        gamma, beta, mean, var = bnp
        return gamma * (y - mean) / jnp.sqrt(var + BN_EPS) + beta

    h = x
    if expand_ratio != 1:
        w1 = jnp.transpose(params["w_exp"], (2, 3, 1, 0))        # (1,1,inp,hid)
        h = lax.conv_general_dilated(h, w1, (1, 1), "VALID",
                                     dimension_numbers=("NHWC", "HWIO", "NHWC"),
                                     precision=lax.Precision.HIGHEST)
        h = jnp.clip(bn(h, params["bn1"]), 0.0, 6.0)

    wdw = jnp.transpose(params["w_dw"], (2, 3, 1, 0))            # (K,K,1,hid)
    h = lax.conv_general_dilated(h, wdw, (stride, stride),
                                 [(pad, pad), (pad, pad)],
                                 dimension_numbers=("NHWC", "HWIO", "NHWC"),
                                 feature_group_count=hidden,
                                 precision=lax.Precision.HIGHEST)
    h = jnp.clip(bn(h, params["bn2"]), 0.0, 6.0)

    w2 = jnp.transpose(params["w_prj"], (2, 3, 1, 0))            # (1,1,hid,oup)
    h = lax.conv_general_dilated(h, w2, (1, 1), "VALID",
                                 dimension_numbers=("NHWC", "HWIO", "NHWC"),
                                 precision=lax.Precision.HIGHEST)
    h = bn(h, params["bn3"])
    if use_res:
        h = h + x
    return h


# ----------------------------------------------------------------------------
if __name__ == "__main__":
    key = jax.random.PRNGKey(0)
    N, H, W = 2, 8, 8
    configs = [
        # (inp, oup, stride, expand_ratio)
        (16, 16, 1, 2),   # expansion + residual connection
        (16, 24, 2, 2),   # stride-2 downsample, no residual
        (16, 16, 1, 1),   # expand_ratio == 1 path (no expand conv)
    ]
    # Tolerance is set by the bf16 MXU operands (f32 accumulate); the
    # depthwise / BN / ReLU6 / residual path is exact f32.
    RTOL, ATOL = 2e-2, 5e-2

    for idx, (inp, oup, stride, er) in enumerate(configs):
        kx, kp, key = jax.random.split(key, 3)
        x = jax.random.normal(kx, (N, H, W, inp), jnp.float32)   # NHWC
        params = init_params(kp, inp, oup, er)

        out = jax.block_until_ready(
            inverted_residual_forward(x, params, inp, oup, stride, er))
        ref = reference_forward(x, params, inp, oup, stride, er)
        np.testing.assert_allclose(np.asarray(out), np.asarray(ref),
                                   rtol=RTOL, atol=ATOL)

        if idx == 0:  # also exercise the PyTorch-layout (NCHW) adapter once
            x_nchw = jnp.transpose(x, (0, 3, 1, 2))
            out_nchw = jax.block_until_ready(
                inverted_residual_forward_nchw(x_nchw, params, inp, oup,
                                               stride, er))
            np.testing.assert_allclose(
                np.asarray(out_nchw),
                np.asarray(jnp.transpose(ref, (0, 3, 1, 2))),
                rtol=RTOL, atol=ATOL)

    print("KERNEL_OK")
</pallas_src>

<mosaic_0001>
module attributes {stable_mosaic.version = 11 : i64} {
  func.func @kernel(%arg0: i32, %arg1: memref<2x8x128xf32, #tpu.memory_space<vmem>>, %arg2: memref<16x32xbf16, #tpu.memory_space<vmem>>, %arg3: memref<1x32xf32, #tpu.memory_space<vmem>>, %arg4: memref<9x32xf32, #tpu.memory_space<vmem>>, %arg5: memref<1x32xf32, #tpu.memory_space<vmem>>, %arg6: memref<32x16xbf16, #tpu.memory_space<vmem>>, %arg7: memref<1x16xf32, #tpu.memory_space<vmem>>, %arg8: memref<2x8x128xf32, #tpu.memory_space<vmem>>, %arg9: memref<2x10x17x32xf32, #tpu.memory_space<vmem>>) attributes {dimension_semantics = [#tpu.dimension_semantics<parallel>], iteration_bounds = array<i64: 1>, scalar_prefetch = 0 : i64, scratch_operands = 1 : i64, tpu.core_type = #tpu.core_type<tc>, window_params = [{transform_indices = @transform_0, window_bounds = array<i64: 2, 8, 128>}, {pipeline_mode = #tpu.pipeline_mode<synchronous>, transform_indices = @transform_1, window_bounds = array<i64: 16, 32>}, {pipeline_mode = #tpu.pipeline_mode<synchronous>, transform_indices = @transform_2, window_bounds = array<i64: 1, 32>}, {pipeline_mode = #tpu.pipeline_mode<synchronous>, transform_indices = @transform_3, window_bounds = array<i64: 9, 32>}, {pipeline_mode = #tpu.pipeline_mode<synchronous>, transform_indices = @transform_4, window_bounds = array<i64: 1, 32>}, {pipeline_mode = #tpu.pipeline_mode<synchronous>, transform_indices = @transform_5, window_bounds = array<i64: 32, 16>}, {pipeline_mode = #tpu.pipeline_mode<synchronous>, transform_indices = @transform_6, window_bounds = array<i64: 1, 16>}, {transform_indices = @transform_7, window_bounds = array<i64: 2, 8, 128>}]} {
    %c0 = arith.constant 0 : index
    %c0_0 = arith.constant 0 : index
    %c0_1 = arith.constant 0 : index
    %0 = vector.load %arg1[%c0, %c0_0, %c0_1] : memref<2x8x128xf32, #tpu.memory_space<vmem>>, vector<2x8x128xf32>
    %1 = vector.shape_cast %0 : vector<2x8x128xf32> to vector<128x16xf32>
    %2 = arith.truncf %1 : vector<128x16xf32> to vector<128x16xbf16>
    %c0_2 = arith.constant 0 : index
    %c0_3 = arith.constant 0 : index
    %3 = vector.load %arg2[%c0_2, %c0_3] : memref<16x32xbf16, #tpu.memory_space<vmem>>, vector<16x32xbf16>
    %cst = arith.constant dense<0.000000e+00> : vector<128x32xf32>
    %4 = tpu.matmul %2, %3, %cst {dimension_numbers = #tpu.dot_dimension_numbers<[1], [0], [0], [1], [0, 0, 1, 1], [], []>} : vector<128x16xbf16>, vector<16x32xbf16>, vector<128x32xf32> -> vector<128x32xf32>
    %c0_4 = arith.constant 0 : index
    %c0_5 = arith.constant 0 : index
    %5 = vector.load %arg3[%c0_4, %c0_5] : memref<1x32xf32, #tpu.memory_space<vmem>>, vector<1x32xf32>
    %6 = vector.broadcast %5 : vector<1x32xf32> to vector<128x32xf32>
    %7 = arith.addf %4, %6 : vector<128x32xf32>
    %cst_6 = arith.constant 0.000000e+00 : f32
    %cst_7 = arith.constant 6.000000e+00 : f32
    %8 = vector.broadcast %cst_6 : f32 to vector<128x32xf32>
    %9 = arith.maximumf %8, %7 : vector<128x32xf32>
    %10 = vector.broadcast %cst_7 : f32 to vector<128x32xf32>
    %11 = arith.minimumf %10, %9 : vector<128x32xf32>
    %cst_8 = arith.constant 0.000000e+00 : f32
    %12 = vector.broadcast %cst_8 : f32 to vector<2x1x10x32xf32>
    %c0_9 = arith.constant 0 : index
    %c0_10 = arith.constant 0 : index
    %c7 = arith.constant 7 : index
    %c0_11 = arith.constant 0 : index
    %13 = vector.load %arg9[%c0_9, %c0_10, %c7, %c0_11] : memref<2x10x17x32xf32, #tpu.memory_space<vmem>>, vector<2x1x10x32xf32>
    tpu.vector_store %arg9[%c0_9, %c0_10, %c7, %c0_11], %12 {strides = array<i32>} : memref<2x10x17x32xf32, #tpu.memory_space<vmem>>, vector<2x1x10x32xf32>,
    %c0_12 = arith.constant 0 : index
    %c9 = arith.constant 9 : index
    %c7_13 = arith.constant 7 : index
    %c0_14 = arith.constant 0 : index
    %14 = vector.load %arg9[%c0_12, %c9, %c7_13, %c0_14] : memref<2x10x17x32xf32, #tpu.memory_space<vmem>>, vector<2x1x10x32xf32>
    tpu.vector_store %arg9[%c0_12, %c9, %c7_13, %c0_14], %12 {strides = array<i32>} : memref<2x10x17x32xf32, #tpu.memory_space<vmem>>, vector<2x1x10x32xf32>,
    %cst_15 = arith.constant 0.000000e+00 : f32
    %15 = vector.broadcast %cst_15 : f32 to vector<2x8x1x32xf32>
    %c0_16 = arith.constant 0 : index
    %c1 = arith.constant 1 : index
    %c7_17 = arith.constant 7 : index
    %c0_18 = arith.constant 0 : index
    %16 = vector.load %arg9[%c0_16, %c1, %c7_17, %c0_18] : memref<2x10x17x32xf32, #tpu.memory_space<vmem>>, vector<2x8x1x32xf32>
    tpu.vector_store %arg9[%c0_16, %c1, %c7_17, %c0_18], %15 {strides = array<i32>} : memref<2x10x17x32xf32, #tpu.memory_space<vmem>>, vector<2x8x1x32xf32>,
    %c0_19 = arith.constant 0 : index
    %c1_20 = arith.constant 1 : index
    %c16 = arith.constant 16 : index
    %c0_21 = arith.constant 0 : index
    %17 = vector.load %arg9[%c0_19, %c1_20, %c16, %c0_21] : memref<2x10x17x32xf32, #tpu.memory_space<vmem>>, vector<2x8x1x32xf32>
    tpu.vector_store %arg9[%c0_19, %c1_20, %c16, %c0_21], %15 {strides = array<i32>} : memref<2x10x17x32xf32, #tpu.memory_space<vmem>>, vector<2x8x1x32xf32>,
    %18 = vector.shape_cast %11 : vector<128x32xf32> to vector<2x8x8x32xf32>
    %c0_22 = arith.constant 0 : index
    %c1_23 = arith.constant 1 : index
    %c8 = arith.constant 8 : index
    %c0_24 = arith.constant 0 : index
    %19 = vector.load %arg9[%c0_22, %c1_23, %c8, %c0_24] : memref<2x10x17x32xf32, #tpu.memory_space<vmem>>, vector<2x8x8x32xf32>
    tpu.vector_store %arg9[%c0_22, %c1_23, %c8, %c0_24], %18 {strides = array<i32>} : memref<2x10x17x32xf32, #tpu.memory_space<vmem>>, vector<2x8x8x32xf32>,
    %c0_25 = arith.constant 0 : index
    %c0_26 = arith.constant 0 : index
    %20 = vector.load %arg4[%c0_25, %c0_26] : memref<9x32xf32, #tpu.memory_space<vmem>>, vector<9x32xf32>
    %21 = vector.extract_strided_slice %20 {offsets = [0, 0], sizes = [1, 32], strides = [1, 1]} : vector<9x32xf32> to vector<1x32xf32>
    %22 = vector.shape_cast %21 : vector<1x32xf32> to vector<1x1x1x32xf32>
    %c0_27 = arith.constant 0 : index
    %c0_28 = arith.constant 0 : index
    %c7_29 = arith.constant 7 : index
    %c0_30 = arith.constant 0 : index
    %23 = vector.load %arg9[%c0_27, %c0_28, %c7_29, %c0_30] : memref<2x10x17x32xf32, #tpu.memory_space<vmem>>, vector<2x8x8x32xf32>
    %24 = vector.broadcast %22 : vector<1x1x1x32xf32> to vector<2x8x8x32xf32>
    %25 = arith.mulf %23, %24 : vector<2x8x8x32xf32>
    %26 = vector.extract_strided_slice %20 {offsets = [1, 0], sizes = [1, 32], strides = [1, 1]} : vector<9x32xf32> to vector<1x32xf32>
    %27 = vector.shape_cast %26 : vector<1x32xf32> to vector<1x1x1x32xf32>
    %c0_31 = arith.constant 0 : index
    %c0_32 = arith.constant 0 : index
    %c8_33 = arith.constant 8 : index
    %c0_34 = arith.constant 0 : index
    %28 = vector.load %arg9[%c0_31, %c0_32, %c8_33, %c0_34] : memref<2x10x17x32xf32, #tpu.memory_space<vmem>>, vector<2x8x8x32xf32>
    %29 = vector.broadcast %27 : vector<1x1x1x32xf32> to vector<2x8x8x32xf32>
    %30 = arith.mulf %28, %29 : vector<2x8x8x32xf32>
    %31 = arith.addf %25, %30 : vector<2x8x8x32xf32>
    %32 = vector.extract_strided_slice %20 {offsets = [2, 0], sizes = [1, 32], strides = [1, 1]} : vector<9x32xf32> to vector<1x32xf32>
    %33 = vector.shape_cast %32 : vector<1x32xf32> to vector<1x1x1x32xf32>
    %c0_35 = arith.constant 0 : index
    %c0_36 = arith.constant 0 : index
    %c9_37 = arith.constant 9 : index
    %c0_38 = arith.constant 0 : index
    %34 = vector.load %arg9[%c0_35, %c0_36, %c9_37, %c0_38] : memref<2x10x17x32xf32, #tpu.memory_space<vmem>>, vector<2x8x8x32xf32>
    %35 = vector.broadcast %33 : vector<1x1x1x32xf32> to vector<2x8x8x32xf32>
    %36 = arith.mulf %34, %35 : vector<2x8x8x32xf32>
    %37 = arith.addf %31, %36 : vector<2x8x8x32xf32>
    %38 = vector.extract_strided_slice %20 {offsets = [3, 0], sizes = [1, 32], strides = [1, 1]} : vector<9x32xf32> to vector<1x32xf32>
    %39 = vector.shape_cast %38 : vector<1x32xf32> to vector<1x1x1x32xf32>
    %c0_39 = arith.constant 0 : index
    %c1_40 = arith.constant 1 : index
    %c7_41 = arith.constant 7 : index
    %c0_42 = arith.constant 0 : index
    %40 = vector.load %arg9[%c0_39, %c1_40, %c7_41, %c0_42] : memref<2x10x17x32xf32, #tpu.memory_space<vmem>>, vector<2x8x8x32xf32>
    %41 = vector.broadcast %39 : vector<1x1x1x32xf32> to vector<2x8x8x32xf32>
    %42 = arith.mulf %40, %41 : vector<2x8x8x32xf32>
    %43 = arith.addf %37, %42 : vector<2x8x8x32xf32>
    %44 = vector.extract_strided_slice %20 {offsets = [4, 0], sizes = [1, 32], strides = [1, 1]} : vector<9x32xf32> to vector<1x32xf32>
    %45 = vector.shape_cast %44 : vector<1x32xf32> to vector<1x1x1x32xf32>
    %c0_43 = arith.constant 0 : index
    %c1_44 = arith.constant 1 : index
    %c8_45 = arith.constant 8 : index
    %c0_46 = arith.constant 0 : index
    %46 = vector.load %arg9[%c0_43, %c1_44, %c8_45, %c0_46] : memref<2x10x17x32xf32, #tpu.memory_space<vmem>>, vector<2x8x8x32xf32>
    %47 = vector.broadcast %45 : vector<1x1x1x32xf32> to vector<2x8x8x32xf32>
    %48 = arith.mulf %46, %47 : vector<2x8x8x32xf32>
    %49 = arith.addf %43, %48 : vector<2x8x8x32xf32>
    %50 = vector.extract_strided_slice %20 {offsets = [5, 0], sizes = [1, 32], strides = [1, 1]} : vector<9x32xf32> to vector<1x32xf32>
    %51 = vector.shape_cast %50 : vector<1x32xf32> to vector<1x1x1x32xf32>
    %c0_47 = arith.constant 0 : index
    %c1_48 = arith.constant 1 : index
    %c9_49 = arith.constant 9 : index
    %c0_50 = arith.constant 0 : index
    %52 = vector.load %arg9[%c0_47, %c1_48, %c9_49, %c0_50] : memref<2x10x17x32xf32, #tpu.memory_space<vmem>>, vector<2x8x8x32xf32>
    %53 = vector.broadcast %51 : vector<1x1x1x32xf32> to vector<2x8x8x32xf32>
    %54 = arith.mulf %52, %53 : vector<2x8x8x32xf32>
    %55 = arith.addf %49, %54 : vector<2x8x8x32xf32>
    %56 = vector.extract_strided_slice %20 {offsets = [6, 0], sizes = [1, 32], strides = [1, 1]} : vector<9x32xf32> to vector<1x32xf32>
    %57 = vector.shape_cast %56 : vector<1x32xf32> to vector<1x1x1x32xf32>
    %c0_51 = arith.constant 0 : index
    %c2 = arith.constant 2 : index
    %c7_52 = arith.constant 7 : index
    %c0_53 = arith.constant 0 : index
    %58 = vector.load %arg9[%c0_51, %c2, %c7_52, %c0_53] : memref<2x10x17x32xf32, #tpu.memory_space<vmem>>, vector<2x8x8x32xf32>
    %59 = vector.broadcast %57 : vector<1x1x1x32xf32> to vector<2x8x8x32xf32>
    %60 = arith.mulf %58, %59 : vector<2x8x8x32xf32>
    %61 = arith.addf %55, %60 : vector<2x8x8x32xf32>
    %62 = vector.extract_strided_slice %20 {offsets = [7, 0], sizes = [1, 32], strides = [1, 1]} : vector<9x32xf32> to vector<1x32xf32>
    %63 = vector.shape_cast %62 : vector<1x32xf32> to vector<1x1x1x32xf32>
    %c0_54 = arith.constant 0 : index
    %c2_55 = arith.constant 2 : index
    %c8_56 = arith.constant 8 : index
    %c0_57 = arith.constant 0 : index
    %64 = vector.load %arg9[%c0_54, %c2_55, %c8_56, %c0_57] : memref<2x10x17x32xf32, #tpu.memory_space<vmem>>, vector<2x8x8x32xf32>
    %65 = vector.broadcast %63 : vector<1x1x1x32xf32> to vector<2x8x8x32xf32>
    %66 = arith.mulf %64, %65 : vector<2x8x8x32xf32>
    %67 = arith.addf %61, %66 : vector<2x8x8x32xf32>
    %68 = vector.extract_strided_slice %20 {offsets = [8, 0], sizes = [1, 32], strides = [1, 1]} : vector<9x32xf32> to vector<1x32xf32>
    %69 = vector.shape_cast %68 : vector<1x32xf32> to vector<1x1x1x32xf32>
    %c0_58 = arith.constant 0 : index
    %c2_59 = arith.constant 2 : index
    %c9_60 = arith.constant 9 : index
    %c0_61 = arith.constant 0 : index
    %70 = vector.load %arg9[%c0_58, %c2_59, %c9_60, %c0_61] : memref<2x10x17x32xf32, #tpu.memory_space<vmem>>, vector<2x8x8x32xf32>
    %71 = vector.broadcast %69 : vector<1x1x1x32xf32> to vector<2x8x8x32xf32>
    %72 = arith.mulf %70, %71 : vector<2x8x8x32xf32>
    %73 = arith.addf %67, %72 : vector<2x8x8x32xf32>
    %74 = vector.shape_cast %73 : vector<2x8x8x32xf32> to vector<128x32xf32>
    %c0_62 = arith.constant 0 : index
    %c0_63 = arith.constant 0 : index
    %75 = vector.load %arg5[%c0_62, %c0_63] : memref<1x32xf32, #tpu.memory_space<vmem>>, vector<1x32xf32>
    %76 = vector.broadcast %75 : vector<1x32xf32> to vector<128x32xf32>
    %77 = arith.addf %74, %76 : vector<128x32xf32>
    %cst_64 = arith.constant 0.000000e+00 : f32
    %cst_65 = arith.constant 6.000000e+00 : f32
    %78 = vector.broadcast %cst_64 : f32 to vector<128x32xf32>
    %79 = arith.maximumf %78, %77 : vector<128x32xf32>
    %80 = vector.broadcast %cst_65 : f32 to vector<128x32xf32>
    %81 = arith.minimumf %80, %79 : vector<128x32xf32>
    %82 = arith.truncf %81 : vector<128x32xf32> to vector<128x32xbf16>
    %c0_66 = arith.constant 0 : index
    %c0_67 = arith.constant 0 : index
    %83 = vector.load %arg6[%c0_66, %c0_67] : memref<32x16xbf16, #tpu.memory_space<vmem>>, vector<32x16xbf16>
    %cst_68 = arith.constant dense<0.000000e+00> : vector<128x16xf32>
    %84 = tpu.matmul %82, %83, %cst_68 {dimension_numbers = #tpu.dot_dimension_numbers<[1], [0], [0], [1], [0, 0, 1, 1], [], []>} : vector<128x32xbf16>, vector<32x16xbf16>, vector<128x16xf32> -> vector<128x16xf32>
    %c0_69 = arith.constant 0 : index
    %c0_70 = arith.constant 0 : index
    %85 = vector.load %arg7[%c0_69, %c0_70] : memref<1x16xf32, #tpu.memory_space<vmem>>, vector<1x16xf32>
    %86 = vector.broadcast %85 : vector<1x16xf32> to vector<128x16xf32>
    %87 = arith.addf %84, %86 : vector<128x16xf32>
    %88 = vector.shape_cast %87 : vector<128x16xf32> to vector<2x8x128xf32>
    %c0_71 = arith.constant 0 : index
    %c0_72 = arith.constant 0 : index
    %c0_73 = arith.constant 0 : index
    %89 = vector.load %arg1[%c0_71, %c0_72, %c0_73] : memref<2x8x128xf32, #tpu.memory_space<vmem>>, vector<2x8x128xf32>
    %90 = arith.addf %88, %89 : vector<2x8x128xf32>
    %c0_74 = arith.constant 0 : index
    %c0_75 = arith.constant 0 : index
    %c0_76 = arith.constant 0 : index
    %91 = vector.load %arg8[%c0_74, %c0_75, %c0_76] : memref<2x8x128xf32, #tpu.memory_space<vmem>>, vector<2x8x128xf32>
    tpu.vector_store %arg8[%c0_74, %c0_75, %c0_76], %90 {strides = array<i32>} : memref<2x8x128xf32, #tpu.memory_space<vmem>>, vector<2x8x128xf32>,
    return
  }
  func.func @transform_0(%arg0: i32) -> (i32, i32, i32) {
    %c0_i32 = arith.constant 0 : i32
    %c0_i32_0 = arith.constant 0 : i32
    %c0_i32_1 = arith.constant 0 : i32
    return %arg0, %c0_i32, %c0_i32_0 : i32, i32, i32
  }
  func.func @transform_1(%arg0: i32) -> (i32, i32) {
    %c0_i32 = arith.constant 0 : i32
    %c0_i32_0 = arith.constant 0 : i32
    %c0_i32_1 = arith.constant 0 : i32
    return %c0_i32, %c0_i32_0 : i32, i32
  }
  func.func @transform_2(%arg0: i32) -> (i32, i32) {
    %c0_i32 = arith.constant 0 : i32
    %c0_i32_0 = arith.constant 0 : i32
    %c0_i32_1 = arith.constant 0 : i32
    return %c0_i32, %c0_i32_0 : i32, i32
  }
  func.func @transform_3(%arg0: i32) -> (i32, i32) {
    %c0_i32 = arith.constant 0 : i32
    %c0_i32_0 = arith.constant 0 : i32
    %c0_i32_1 = arith.constant 0 : i32
    return %c0_i32, %c0_i32_0 : i32, i32
  }
  func.func @transform_4(%arg0: i32) -> (i32, i32) {
    %c0_i32 = arith.constant 0 : i32
    %c0_i32_0 = arith.constant 0 : i32
    %c0_i32_1 = arith.constant 0 : i32
    return %c0_i32, %c0_i32_0 : i32, i32
  }
  func.func @transform_5(%arg0: i32) -> (i32, i32) {
    %c0_i32 = arith.constant 0 : i32
    %c0_i32_0 = arith.constant 0 : i32
    %c0_i32_1 = arith.constant 0 : i32
    return %c0_i32, %c0_i32_0 : i32, i32
  }
  func.func @transform_6(%arg0: i32) -> (i32, i32) {
    %c0_i32 = arith.constant 0 : i32
    %c0_i32_0 = arith.constant 0 : i32
    %c0_i32_1 = arith.constant 0 : i32
    return %c0_i32, %c0_i32_0 : i32, i32
  }
  func.func @transform_7(%arg0: i32) -> (i32, i32, i32) {
    %c0_i32 = arith.constant 0 : i32
    %c0_i32_0 = arith.constant 0 : i32
    %c0_i32_1 = arith.constant 0 : i32
    return %arg0, %c0_i32, %c0_i32_0 : i32, i32, i32
  }
}

module attributes {stable_mosaic.version = 11 : i64} {
  func.func @kernel(%arg0: i32, %arg1: memref<2x8x8x16xf32, #tpu.memory_space<vmem>>, %arg2: memref<16x32xbf16, #tpu.memory_space<vmem>>, %arg3: memref<1x32xf32, #tpu.memory_space<vmem>>, %arg4: memref<9x32xf32, #tpu.memory_space<vmem>>, %arg5: memref<1x32xf32, #tpu.memory_space<vmem>>, %arg6: memref<32x16xbf16, #tpu.memory_space<vmem>>, %arg7: memref<1x16xf32, #tpu.memory_space<vmem>>, %arg8: memref<2x8x8x16xf32, #tpu.memory_space<vmem>>, %arg9: memref<2x10x17x32xf32, #tpu.memory_space<vmem>>) attributes {dimension_semantics = [#tpu.dimension_semantics<parallel>], iteration_bounds = array<i64: 1>, scalar_prefetch = 0 : i64, scratch_operands = 1 : i64, tpu.core_type = #tpu.core_type<tc>, window_params = [{transform_indices = @transform_0, window_bounds = array<i64: 2, 8, 8, 16>}, {pipeline_mode = #tpu.pipeline_mode<synchronous>, transform_indices = @transform_1, window_bounds = array<i64: 16, 32>}, {pipeline_mode = #tpu.pipeline_mode<synchronous>, transform_indices = @transform_2, window_bounds = array<i64: 1, 32>}, {pipeline_mode = #tpu.pipeline_mode<synchronous>, transform_indices = @transform_3, window_bounds = array<i64: 9, 32>}, {pipeline_mode = #tpu.pipeline_mode<synchronous>, transform_indices = @transform_4, window_bounds = array<i64: 1, 32>}, {pipeline_mode = #tpu.pipeline_mode<synchronous>, transform_indices = @transform_5, window_bounds = array<i64: 32, 16>}, {pipeline_mode = #tpu.pipeline_mode<synchronous>, transform_indices = @transform_6, window_bounds = array<i64: 1, 16>}, {transform_indices = @transform_7, window_bounds = array<i64: 2, 8, 8, 16>}]} {
    %c0 = arith.constant 0 : index
    %c0_0 = arith.constant 0 : index
    %c0_1 = arith.constant 0 : index
    %c0_2 = arith.constant 0 : index
    %0 = vector.load %arg1[%c0, %c0_0, %c0_1, %c0_2] : memref<2x8x8x16xf32, #tpu.memory_space<vmem>>, vector<2x8x8x16xf32>
    %1 = vector.shape_cast %0 : vector<2x8x8x16xf32> to vector<128x16xf32>
    %2 = arith.truncf %1 : vector<128x16xf32> to vector<128x16xbf16>
    %c0_3 = arith.constant 0 : index
    %c0_4 = arith.constant 0 : index
    %3 = vector.load %arg2[%c0_3, %c0_4] : memref<16x32xbf16, #tpu.memory_space<vmem>>, vector<16x32xbf16>
    %cst = arith.constant dense<0.000000e+00> : vector<128x32xf32>
    %4 = tpu.matmul %2, %3, %cst {dimension_numbers = #tpu.dot_dimension_numbers<[1], [0], [0], [1], [0, 0, 1, 1], [], []>} : vector<128x16xbf16>, vector<16x32xbf16>, vector<128x32xf32> -> vector<128x32xf32>
    %c0_5 = arith.constant 0 : index
    %c0_6 = arith.constant 0 : index
    %5 = vector.load %arg3[%c0_5, %c0_6] : memref<1x32xf32, #tpu.memory_space<vmem>>, vector<1x32xf32>
    %6 = vector.broadcast %5 : vector<1x32xf32> to vector<128x32xf32>
    %7 = arith.addf %4, %6 : vector<128x32xf32>
    %cst_7 = arith.constant 0.000000e+00 : f32
    %cst_8 = arith.constant 6.000000e+00 : f32
    %8 = vector.broadcast %cst_7 : f32 to vector<128x32xf32>
    %9 = arith.maximumf %8, %7 : vector<128x32xf32>
    %10 = vector.broadcast %cst_8 : f32 to vector<128x32xf32>
    %11 = arith.minimumf %10, %9 : vector<128x32xf32>
    %cst_9 = arith.constant 0.000000e+00 : f32
    %12 = vector.broadcast %cst_9 : f32 to vector<2x1x10x32xf32>
    %c0_10 = arith.constant 0 : index
    %c0_11 = arith.constant 0 : index
    %c7 = arith.constant 7 : index
    %c0_12 = arith.constant 0 : index
    %13 = vector.load %arg9[%c0_10, %c0_11, %c7, %c0_12] : memref<2x10x17x32xf32, #tpu.memory_space<vmem>>, vector<2x1x10x32xf32>
    tpu.vector_store %arg9[%c0_10, %c0_11, %c7, %c0_12], %12 {strides = array<i32>} : memref<2x10x17x32xf32, #tpu.memory_space<vmem>>, vector<2x1x10x32xf32>,
    %c0_13 = arith.constant 0 : index
    %c9 = arith.constant 9 : index
    %c7_14 = arith.constant 7 : index
    %c0_15 = arith.constant 0 : index
    %14 = vector.load %arg9[%c0_13, %c9, %c7_14, %c0_15] : memref<2x10x17x32xf32, #tpu.memory_space<vmem>>, vector<2x1x10x32xf32>
    tpu.vector_store %arg9[%c0_13, %c9, %c7_14, %c0_15], %12 {strides = array<i32>} : memref<2x10x17x32xf32, #tpu.memory_space<vmem>>, vector<2x1x10x32xf32>,
    %cst_16 = arith.constant 0.000000e+00 : f32
    %15 = vector.broadcast %cst_16 : f32 to vector<2x8x1x32xf32>
    %c0_17 = arith.constant 0 : index
    %c1 = arith.constant 1 : index
    %c7_18 = arith.constant 7 : index
    %c0_19 = arith.constant 0 : index
    %16 = vector.load %arg9[%c0_17, %c1, %c7_18, %c0_19] : memref<2x10x17x32xf32, #tpu.memory_space<vmem>>, vector<2x8x1x32xf32>
    tpu.vector_store %arg9[%c0_17, %c1, %c7_18, %c0_19], %15 {strides = array<i32>} : memref<2x10x17x32xf32, #tpu.memory_space<vmem>>, vector<2x8x1x32xf32>,
    %c0_20 = arith.constant 0 : index
    %c1_21 = arith.constant 1 : index
    %c16 = arith.constant 16 : index
    %c0_22 = arith.constant 0 : index
    %17 = vector.load %arg9[%c0_20, %c1_21, %c16, %c0_22] : memref<2x10x17x32xf32, #tpu.memory_space<vmem>>, vector<2x8x1x32xf32>
    tpu.vector_store %arg9[%c0_20, %c1_21, %c16, %c0_22], %15 {strides = array<i32>} : memref<2x10x17x32xf32, #tpu.memory_space<vmem>>, vector<2x8x1x32xf32>,
    %18 = vector.shape_cast %11 : vector<128x32xf32> to vector<2x8x8x32xf32>
    %c0_23 = arith.constant 0 : index
    %c1_24 = arith.constant 1 : index
    %c8 = arith.constant 8 : index
    %c0_25 = arith.constant 0 : index
    %19 = vector.load %arg9[%c0_23, %c1_24, %c8, %c0_25] : memref<2x10x17x32xf32, #tpu.memory_space<vmem>>, vector<2x8x8x32xf32>
    tpu.vector_store %arg9[%c0_23, %c1_24, %c8, %c0_25], %18 {strides = array<i32>} : memref<2x10x17x32xf32, #tpu.memory_space<vmem>>, vector<2x8x8x32xf32>,
    %c0_26 = arith.constant 0 : index
    %c0_27 = arith.constant 0 : index
    %20 = vector.load %arg4[%c0_26, %c0_27] : memref<9x32xf32, #tpu.memory_space<vmem>>, vector<9x32xf32>
    %21 = vector.extract_strided_slice %20 {offsets = [0, 0], sizes = [1, 32], strides = [1, 1]} : vector<9x32xf32> to vector<1x32xf32>
    %22 = vector.shape_cast %21 : vector<1x32xf32> to vector<1x1x1x32xf32>
    %c0_28 = arith.constant 0 : index
    %c0_29 = arith.constant 0 : index
    %c7_30 = arith.constant 7 : index
    %c0_31 = arith.constant 0 : index
    %23 = vector.load %arg9[%c0_28, %c0_29, %c7_30, %c0_31] : memref<2x10x17x32xf32, #tpu.memory_space<vmem>>, vector<2x8x8x32xf32>
    %24 = vector.broadcast %22 : vector<1x1x1x32xf32> to vector<2x8x8x32xf32>
    %25 = arith.mulf %23, %24 : vector<2x8x8x32xf32>
    %26 = vector.extract_strided_slice %20 {offsets = [1, 0], sizes = [1, 32], strides = [1, 1]} : vector<9x32xf32> to vector<1x32xf32>
    %27 = vector.shape_cast %26 : vector<1x32xf32> to vector<1x1x1x32xf32>
    %c0_32 = arith.constant 0 : index
    %c0_33 = arith.constant 0 : index
    %c8_34 = arith.constant 8 : index
    %c0_35 = arith.constant 0 : index
    %28 = vector.load %arg9[%c0_32, %c0_33, %c8_34, %c0_35] : memref<2x10x17x32xf32, #tpu.memory_space<vmem>>, vector<2x8x8x32xf32>
    %29 = vector.broadcast %27 : vector<1x1x1x32xf32> to vector<2x8x8x32xf32>
    %30 = arith.mulf %28, %29 : vector<2x8x8x32xf32>
    %31 = arith.addf %25, %30 : vector<2x8x8x32xf32>
    %32 = vector.extract_strided_slice %20 {offsets = [2, 0], sizes = [1, 32], strides = [1, 1]} : vector<9x32xf32> to vector<1x32xf32>
    %33 = vector.shape_cast %32 : vector<1x32xf32> to vector<1x1x1x32xf32>
    %c0_36 = arith.constant 0 : index
    %c0_37 = arith.constant 0 : index
    %c9_38 = arith.constant 9 : index
    %c0_39 = arith.constant 0 : index
    %34 = vector.load %arg9[%c0_36, %c0_37, %c9_38, %c0_39] : memref<2x10x17x32xf32, #tpu.memory_space<vmem>>, vector<2x8x8x32xf32>
    %35 = vector.broadcast %33 : vector<1x1x1x32xf32> to vector<2x8x8x32xf32>
    %36 = arith.mulf %34, %35 : vector<2x8x8x32xf32>
    %37 = arith.addf %31, %36 : vector<2x8x8x32xf32>
    %38 = vector.extract_strided_slice %20 {offsets = [3, 0], sizes = [1, 32], strides = [1, 1]} : vector<9x32xf32> to vector<1x32xf32>
    %39 = vector.shape_cast %38 : vector<1x32xf32> to vector<1x1x1x32xf32>
    %c0_40 = arith.constant 0 : index
    %c1_41 = arith.constant 1 : index
    %c7_42 = arith.constant 7 : index
    %c0_43 = arith.constant 0 : index
    %40 = vector.load %arg9[%c0_40, %c1_41, %c7_42, %c0_43] : memref<2x10x17x32xf32, #tpu.memory_space<vmem>>, vector<2x8x8x32xf32>
    %41 = vector.broadcast %39 : vector<1x1x1x32xf32> to vector<2x8x8x32xf32>
    %42 = arith.mulf %40, %41 : vector<2x8x8x32xf32>
    %43 = arith.addf %37, %42 : vector<2x8x8x32xf32>
    %44 = vector.extract_strided_slice %20 {offsets = [4, 0], sizes = [1, 32], strides = [1, 1]} : vector<9x32xf32> to vector<1x32xf32>
    %45 = vector.shape_cast %44 : vector<1x32xf32> to vector<1x1x1x32xf32>
    %c0_44 = arith.constant 0 : index
    %c1_45 = arith.constant 1 : index
    %c8_46 = arith.constant 8 : index
    %c0_47 = arith.constant 0 : index
    %46 = vector.load %arg9[%c0_44, %c1_45, %c8_46, %c0_47] : memref<2x10x17x32xf32, #tpu.memory_space<vmem>>, vector<2x8x8x32xf32>
    %47 = vector.broadcast %45 : vector<1x1x1x32xf32> to vector<2x8x8x32xf32>
    %48 = arith.mulf %46, %47 : vector<2x8x8x32xf32>
    %49 = arith.addf %43, %48 : vector<2x8x8x32xf32>
    %50 = vector.extract_strided_slice %20 {offsets = [5, 0], sizes = [1, 32], strides = [1, 1]} : vector<9x32xf32> to vector<1x32xf32>
    %51 = vector.shape_cast %50 : vector<1x32xf32> to vector<1x1x1x32xf32>
    %c0_48 = arith.constant 0 : index
    %c1_49 = arith.constant 1 : index
    %c9_50 = arith.constant 9 : index
    %c0_51 = arith.constant 0 : index
    %52 = vector.load %arg9[%c0_48, %c1_49, %c9_50, %c0_51] : memref<2x10x17x32xf32, #tpu.memory_space<vmem>>, vector<2x8x8x32xf32>
    %53 = vector.broadcast %51 : vector<1x1x1x32xf32> to vector<2x8x8x32xf32>
    %54 = arith.mulf %52, %53 : vector<2x8x8x32xf32>
    %55 = arith.addf %49, %54 : vector<2x8x8x32xf32>
    %56 = vector.extract_strided_slice %20 {offsets = [6, 0], sizes = [1, 32], strides = [1, 1]} : vector<9x32xf32> to vector<1x32xf32>
    %57 = vector.shape_cast %56 : vector<1x32xf32> to vector<1x1x1x32xf32>
    %c0_52 = arith.constant 0 : index
    %c2 = arith.constant 2 : index
    %c7_53 = arith.constant 7 : index
    %c0_54 = arith.constant 0 : index
    %58 = vector.load %arg9[%c0_52, %c2, %c7_53, %c0_54] : memref<2x10x17x32xf32, #tpu.memory_space<vmem>>, vector<2x8x8x32xf32>
    %59 = vector.broadcast %57 : vector<1x1x1x32xf32> to vector<2x8x8x32xf32>
    %60 = arith.mulf %58, %59 : vector<2x8x8x32xf32>
    %61 = arith.addf %55, %60 : vector<2x8x8x32xf32>
    %62 = vector.extract_strided_slice %20 {offsets = [7, 0], sizes = [1, 32], strides = [1, 1]} : vector<9x32xf32> to vector<1x32xf32>
    %63 = vector.shape_cast %62 : vector<1x32xf32> to vector<1x1x1x32xf32>
    %c0_55 = arith.constant 0 : index
    %c2_56 = arith.constant 2 : index
    %c8_57 = arith.constant 8 : index
    %c0_58 = arith.constant 0 : index
    %64 = vector.load %arg9[%c0_55, %c2_56, %c8_57, %c0_58] : memref<2x10x17x32xf32, #tpu.memory_space<vmem>>, vector<2x8x8x32xf32>
    %65 = vector.broadcast %63 : vector<1x1x1x32xf32> to vector<2x8x8x32xf32>
    %66 = arith.mulf %64, %65 : vector<2x8x8x32xf32>
    %67 = arith.addf %61, %66 : vector<2x8x8x32xf32>
    %68 = vector.extract_strided_slice %20 {offsets = [8, 0], sizes = [1, 32], strides = [1, 1]} : vector<9x32xf32> to vector<1x32xf32>
    %69 = vector.shape_cast %68 : vector<1x32xf32> to vector<1x1x1x32xf32>
    %c0_59 = arith.constant 0 : index
    %c2_60 = arith.constant 2 : index
    %c9_61 = arith.constant 9 : index
    %c0_62 = arith.constant 0 : index
    %70 = vector.load %arg9[%c0_59, %c2_60, %c9_61, %c0_62] : memref<2x10x17x32xf32, #tpu.memory_space<vmem>>, vector<2x8x8x32xf32>
    %71 = vector.broadcast %69 : vector<1x1x1x32xf32> to vector<2x8x8x32xf32>
    %72 = arith.mulf %70, %71 : vector<2x8x8x32xf32>
    %73 = arith.addf %67, %72 : vector<2x8x8x32xf32>
    %74 = vector.shape_cast %73 : vector<2x8x8x32xf32> to vector<128x32xf32>
    %c0_63 = arith.constant 0 : index
    %c0_64 = arith.constant 0 : index
    %75 = vector.load %arg5[%c0_63, %c0_64] : memref<1x32xf32, #tpu.memory_space<vmem>>, vector<1x32xf32>
    %76 = vector.broadcast %75 : vector<1x32xf32> to vector<128x32xf32>
    %77 = arith.addf %74, %76 : vector<128x32xf32>
    %cst_65 = arith.constant 0.000000e+00 : f32
    %cst_66 = arith.constant 6.000000e+00 : f32
    %78 = vector.broadcast %cst_65 : f32 to vector<128x32xf32>
    %79 = arith.maximumf %78, %77 : vector<128x32xf32>
    %80 = vector.broadcast %cst_66 : f32 to vector<128x32xf32>
    %81 = arith.minimumf %80, %79 : vector<128x32xf32>
    %82 = arith.truncf %81 : vector<128x32xf32> to vector<128x32xbf16>
    %c0_67 = arith.constant 0 : index
    %c0_68 = arith.constant 0 : index
    %83 = vector.load %arg6[%c0_67, %c0_68] : memref<32x16xbf16, #tpu.memory_space<vmem>>, vector<32x16xbf16>
    %cst_69 = arith.constant dense<0.000000e+00> : vector<128x16xf32>
    %84 = tpu.matmul %82, %83, %cst_69 {dimension_numbers = #tpu.dot_dimension_numbers<[1], [0], [0], [1], [0, 0, 1, 1], [], []>} : vector<128x32xbf16>, vector<32x16xbf16>, vector<128x16xf32> -> vector<128x16xf32>
    %c0_70 = arith.constant 0 : index
    %c0_71 = arith.constant 0 : index
    %85 = vector.load %arg7[%c0_70, %c0_71] : memref<1x16xf32, #tpu.memory_space<vmem>>, vector<1x16xf32>
    %86 = vector.broadcast %85 : vector<1x16xf32> to vector<128x16xf32>
    %87 = arith.addf %84, %86 : vector<128x16xf32>
    %88 = arith.addf %87, %1 : vector<128x16xf32>
    %89 = vector.shape_cast %88 : vector<128x16xf32> to vector<2x8x8x16xf32>
    %c0_72 = arith.constant 0 : index
    %c0_73 = arith.constant 0 : index
    %c0_74 = arith.constant 0 : index
    %c0_75 = arith.constant 0 : index
    %90 = vector.load %arg8[%c0_72, %c0_73, %c0_74, %c0_75] : memref<2x8x8x16xf32, #tpu.memory_space<vmem>>, vector<2x8x8x16xf32>
    tpu.vector_store %arg8[%c0_72, %c0_73, %c0_74, %c0_75], %89 {strides = array<i32>} : memref<2x8x8x16xf32, #tpu.memory_space<vmem>>, vector<2x8x8x16xf32>,
    return
  }
  func.func @transform_0(%arg0: i32) -> (i32, i32, i32, i32) {
    %c0_i32 = arith.constant 0 : i32
    %c0_i32_0 = arith.constant 0 : i32
    %c0_i32_1 = arith.constant 0 : i32
    %c0_i32_2 = arith.constant 0 : i32
    return %arg0, %c0_i32, %c0_i32_0, %c0_i32_1 : i32, i32, i32, i32
  }
  func.func @transform_1(%arg0: i32) -> (i32, i32) {
    %c0_i32 = arith.constant 0 : i32
    %c0_i32_0 = arith.constant 0 : i32
    %c0_i32_1 = arith.constant 0 : i32
    return %c0_i32, %c0_i32_0 : i32, i32
  }
  func.func @transform_2(%arg0: i32) -> (i32, i32) {
    %c0_i32 = arith.constant 0 : i32
    %c0_i32_0 = arith.constant 0 : i32
    %c0_i32_1 = arith.constant 0 : i32
    return %c0_i32, %c0_i32_0 : i32, i32
  }
  func.func @transform_3(%arg0: i32) -> (i32, i32) {
    %c0_i32 = arith.constant 0 : i32
    %c0_i32_0 = arith.constant 0 : i32
    %c0_i32_1 = arith.constant 0 : i32
    return %c0_i32, %c0_i32_0 : i32, i32
  }
  func.func @transform_4(%arg0: i32) -> (i32, i32) {
    %c0_i32 = arith.constant 0 : i32
    %c0_i32_0 = arith.constant 0 : i32
    %c0_i32_1 = arith.constant 0 : i32
    return %c0_i32, %c0_i32_0 : i32, i32
  }
  func.func @transform_5(%arg0: i32) -> (i32, i32) {
    %c0_i32 = arith.constant 0 : i32
    %c0_i32_0 = arith.constant 0 : i32
    %c0_i32_1 = arith.constant 0 : i32
    return %c0_i32, %c0_i32_0 : i32, i32
  }
  func.func @transform_6(%arg0: i32) -> (i32, i32) {
    %c0_i32 = arith.constant 0 : i32
    %c0_i32_0 = arith.constant 0 : i32
    %c0_i32_1 = arith.constant 0 : i32
    return %c0_i32, %c0_i32_0 : i32, i32
  }
  func.func @transform_7(%arg0: i32) -> (i32, i32, i32, i32) {
    %c0_i32 = arith.constant 0 : i32
    %c0_i32_0 = arith.constant 0 : i32
    %c0_i32_1 = arith.constant 0 : i32
    %c0_i32_2 = arith.constant 0 : i32
    return %arg0, %c0_i32, %c0_i32_0, %c0_i32_1 : i32, i32, i32, i32
  }
}

</mosaic_0001>

<llo_original>
// kernel: tpu_custom_call.1
$region0: #{tpu_custom_call.1}
  #allocation0 [shape = 'u32[]', space=smem, size = 0x4, offset = 0x4, fixed_abs, tag = 'smem constant byte address 0x4 - core index']
  #allocation1 [shape = 'u32[144,128]{1,0:T(1,128)}', space=vmem, size = 0x12000, scoped, tag = 'internal scratch']
  #allocation2 [shape = 'f32[2,10,17,32]{3,2,1,0:T(8,128)}', space=vmem, size = 0x3c000, scoped, tag = 'scratch operand']
  %s0 = inlined_call_operand.hbm [shape: f32[2,8,8,16], index: 0, kind: input, shape index: {}]
  %s1 = inlined_call_operand.vmem [shape: bf16[16,32], index: 1, kind: input, shape index: {}]
  %s2 = inlined_call_operand.vmem [shape: f32[1,32], index: 2, kind: input, shape index: {}]
  %s3 = inlined_call_operand.vmem [shape: f32[9,32], index: 3, kind: input, shape index: {}]
  %s4 = inlined_call_operand.vmem [shape: f32[1,32], index: 4, kind: input, shape index: {}]
  %s5 = inlined_call_operand.vmem [shape: bf16[32,16], index: 5, kind: input, shape index: {}]
  %s6 = inlined_call_operand.vmem [shape: f32[1,16], index: 6, kind: input, shape index: {}]
  %s7 = inlined_call_operand.hbm [shape: f32[2,8,8,16], index: 7, kind: output, shape index: {}]
  %s8 = sld [smem:[#allocation0]]
  $region42: #{tpu_custom_call.1} parent=0
    _
  %s10 = ssub.s32 1, %s8
  %s11 = scalar_select 0, %s10, %s8
  $region1: #{tpu_custom_call.1} parent=0
    #allocation3 [shape = 'u8[65536]{0}', space=vmem, size = 0x10000, scoped, tag = 'input window, operand 0, single buffered']
    #allocation4 [shape = 's32[1]{0}', space=sflag, size = 0x4, scoped, tag = 'scoped memory for tpu_custom_call.1']
    #allocation5 [shape = 's32[1]{0}', space=sflag, size = 0x4, scoped, tag = 'scoped memory for tpu_custom_call.1']
    #allocation6 [shape = 'u8[65536]{0}', space=vmem, size = 0x10000, scoped, tag = 'output window, operand 0, single buffered']
    %12 = vsyncpa [#allocation4], 0
    %13 = vsyncpa [#allocation5], 0
    // Predicated region
    $region2: #{tpu_custom_call.1} parent=1 // pred_check
      _
    $region3: #{tpu_custom_call.1} parent=1 // pred_check_branch
      %15 = sbr.rel (0) target = $region5
    $region4: #{tpu_custom_call.1} parent=1 // pred_region
      %s17 = ssub.s32 2048, 2048
      %18 = vsyncadd [#allocation4], %s17
      %s19 = sshll.u32 [#allocation3], 4
      %s20 = int_to_ptr.vmem [resolvable:$true] %s19
      %25 = dma.hbm_to_vmem [thread:$0]  %s0, 2048, %s20, [#allocation4], 128, 128, 8
    $region5: #{tpu_custom_call.1} parent=1 // pred_fallthru
      _
    // Predicated region
    $region6: #{tpu_custom_call.1} parent=1 // pred_check
      _
    $region7: #{tpu_custom_call.1} parent=1 // pred_check_branch
      %27 = sbr.rel (0) target = $region9
    $region8: #{tpu_custom_call.1} parent=1 // pred_region
      _
    $region9: #{tpu_custom_call.1} parent=1 // pred_fallthru
      _
    // Predicated region
    $region10: #{tpu_custom_call.1} parent=1 // pred_check
      _
    $region11: #{tpu_custom_call.1} parent=1 // pred_check_branch
      %29 = sbr.rel (0) target = $region13
    $region12: #{tpu_custom_call.1} parent=1 // pred_region
      _
    $region13: #{tpu_custom_call.1} parent=1 // pred_fallthru
      _
    // Predicated region
    $region14: #{tpu_custom_call.1} parent=1 // pred_check
      _
    $region15: #{tpu_custom_call.1} parent=1 // pred_check_branch
      %31 = sbr.rel (0) target = $region17
    $region16: #{tpu_custom_call.1} parent=1 // pred_region
      _
    $region17: #{tpu_custom_call.1} parent=1 // pred_fallthru
      _
    // Predicated region
    $region18: #{tpu_custom_call.1} parent=1 // pred_check
      _
    $region19: #{tpu_custom_call.1} parent=1 // pred_check_branch
      %33 = sbr.rel (0) target = $region21
    $region20: #{tpu_custom_call.1} parent=1 // pred_region
      _
    $region21: #{tpu_custom_call.1} parent=1 // pred_fallthru
      _
    // Predicated region
    $region22: #{tpu_custom_call.1} parent=1 // pred_check
      _
    $region23: #{tpu_custom_call.1} parent=1 // pred_check_branch
      %35 = sbr.rel (0) target = $region25
    $region24: #{tpu_custom_call.1} parent=1 // pred_region
      _
    $region25: #{tpu_custom_call.1} parent=1 // pred_fallthru
      _
    // Predicated region
    $region26: #{tpu_custom_call.1} parent=1 // pred_check
      _
    $region27: #{tpu_custom_call.1} parent=1 // pred_check_branch
      %37 = sbr.rel (0) target = $region29
    $region28: #{tpu_custom_call.1} parent=1 // pred_region
      _
    $region29: #{tpu_custom_call.1} parent=1 // pred_fallthru
      _
    // Predicated region
    $region30: #{tpu_custom_call.1} parent=1 // pred_check
      _
    $region31: #{tpu_custom_call.1} parent=1 // pred_check_branch
      %39 = sbr.rel (0) target = $region33
    $region32: #{tpu_custom_call.1} parent=1 // pred_region
      %40 = dma.done [#allocation4], 2048
    $region33: #{tpu_custom_call.1} parent=1 // pred_fallthru
      _
    %v42 = vld [vmem:[#allocation3] sm:$0xff]
    %v43 = vld [vmem:[#allocation3 + $0x8] sm:$0xff]
    %v44 = vld [vmem:[#allocation3 + $0x10] sm:$0xff]
    %v45 = vld [vmem:[#allocation3 + $0x18] sm:$0xff]
    %v46 = vld [vmem:[#allocation3 + $0x20] sm:$0xff]
    %v47 = vld [vmem:[#allocation3 + $0x28] sm:$0xff]
    %v48 = vld [vmem:[#allocation3 + $0x30] sm:$0xff]
    %v49 = vld [vmem:[#allocation3 + $0x38] sm:$0xff]
    %v50 = vld [vmem:[#allocation3 + $0x40] sm:$0xff]
    %v51 = vld [vmem:[#allocation3 + $0x48] sm:$0xff]
    %v52 = vld [vmem:[#allocation3 + $0x50] sm:$0xff]
    %v53 = vld [vmem:[#allocation3 + $0x58] sm:$0xff]
    %v54 = vld [vmem:[#allocation3 + $0x60] sm:$0xff]
    %v55 = vld [vmem:[#allocation3 + $0x68] sm:$0xff]
    %v56 = vld [vmem:[#allocation3 + $0x70] sm:$0xff]
    %v57 = vld [vmem:[#allocation3 + $0x78] sm:$0xff]
    %v58 = vpack.c.bf16 %v43, %v42
    %v59 = vpack.c.bf16 %v45, %v44
    %v60 = vpack.c.bf16 %v47, %v46
    %v61 = vpack.c.bf16 %v49, %v48
    %v62 = vpack.c.bf16 %v51, %v50
    %v63 = vpack.c.bf16 %v53, %v52
    %v64 = vpack.c.bf16 %v55, %v54
    %v65 = vpack.c.bf16 %v57, %v56
    %v66 = vld [vmem:[%s1] sm:$0xf]
    %v67 = vld [vmem:[%s1 + $0x4] sm:$0xf]
    %v68 = vld [vmem:[%s2] sm:$0x1]
    %v70 = vlaneseq
    %v71 = vshrl.u32 %v70, 7
    %v72 = vsub.s32 0, %v71
    %v73 = vrot.slane %v68, %v72
    %v77 = vunpack.c.l.b16 %v66
    %v78 = vunpack.c.l.b16 %v67
    %v79 = vpack.c.b16 %v78, %v77
    %vm81 = vcmask 130048
    %v83 = vsel %vm81, %v58, 0
    %v86 = vsel %vm81, %v59, 0
    %v89 = vsel %vm81, %v60, 0
    %v92 = vsel %vm81, %v61, 0
    %v95 = vsel %vm81, %v62, 0
    %v98 = vsel %vm81, %v63, 0
    %v101 = vsel %vm81, %v64, 0
    %v104 = vsel %vm81, %v65, 0
    %106 = vmatprep.subr.bf16.mxu0 0
    %107 = vmatpush1.bf16.msra.mxu0 %v79
    %108 = vmatprep.subr.bf16.mxu0 0
    %109 = vmatpush1.bf16.msra.mxu0 0
    %110 = vmatprep.subr.bf16.mxu0 0
    %111 = vmatpush1.bf16.msra.mxu0 0
    %112 = vmatprep.subr.bf16.mxu0 0
    %113 = vmatpush1.bf16.msra.mxu0 0
    %114 = vmatprep.subr.bf16.mxu0 0
    %115 = vmatpush1.bf16.msra.mxu0 0
    %116 = vmatprep.subr.bf16.mxu0 0
    %117 = vmatpush1.bf16.msra.mxu0 0
    %118 = vmatprep.subr.bf16.mxu0 0
    %119 = vmatpush1.bf16.msra.mxu0 0
    %120 = vmatprep.subr.bf16.mxu0 0
    %121 = vmatpush1.bf16.msra.mxu0 0
    %122 = vmatprep.subr.bf16.mxu0 0
    %123 = vmatpush1.bf16.msra.mxu0 0
    %124 = vmatprep.subr.bf16.mxu0 0
    %125 = vmatpush1.bf16.msra.mxu0 0
    %126 = vmatprep.subr.bf16.mxu0 0
    %127 = vmatpush1.bf16.msra.mxu0 0
    %128 = vmatprep.subr.bf16.mxu0 0
    %129 = vmatpush1.bf16.msra.mxu0 0
    %130 = vmatprep.subr.bf16.mxu0 0
    %131 = vmatpush1.bf16.msra.mxu0 0
    %132 = vmatprep.subr.bf16.mxu0 0
    %133 = vmatpush1.bf16.msra.mxu0 0
    %134 = vmatprep.subr.bf16.mxu0 0
    %135 = vmatpush1.bf16.msra.mxu0 0
    %136 = vmatprep.subr.bf16.mxu0 0
    %137 = vmatpush1.bf16.msra.mxu0 0
    %138 = vmatprep.mubr.bf16.mxu0 0
    %139 = vmatmul.mubr.bf16.gmra.mrb[0].mxu0 %v83
    %v140 = vpop.f32.mrb[0].mxu0
    %v141 = vadd.f32 %v73, %v140
    %v142 = vpop.f32.mrb[0].mxu0
    %v143 = vpop.f32.mrb[0].mxu0
    %v144 = vadd.f32 %v73, %v143
    %v145 = vpop.f32.mrb[0].mxu0
    %146 = vmatprep.mubr.bf16.mxu0 0
    %147 = vmatmul.mubr.bf16.gmra.mrb[0].mxu0 %v86
    %v148 = vpop.f32.mrb[0].mxu0
    %v149 = vadd.f32 %v73, %v148
    %v150 = vpop.f32.mrb[0].mxu0
    %v151 = vpop.f32.mrb[0].mxu0
    %v152 = vadd.f32 %v73, %v151
    %v153 = vpop.f32.mrb[0].mxu0
    %154 = vmatprep.mubr.bf16.mxu0 0
    %155 = vmatmul.mubr.bf16.gmra.mrb[0].mxu0 %v89
    %v156 = vpop.f32.mrb[0].mxu0
    %v157 = vadd.f32 %v73, %v156
    %v158 = vpop.f32.mrb[0].mxu0
    %v159 = vpop.f32.mrb[0].mxu0
    %v160 = vadd.f32 %v73, %v159
    %v161 = vpop.f32.mrb[0].mxu0
    %162 = vmatprep.mubr.bf16.mxu0 0
    %163 = vmatmul.mubr.bf16.gmra.mrb[0].mxu0 %v92
    %v164 = vpop.f32.mrb[0].mxu0
    %v165 = vadd.f32 %v73, %v164
    %v166 = vpop.f32.mrb[0].mxu0
    %v167 = vpop.f32.mrb[0].mxu0
    %v168 = vadd.f32 %v73, %v167
    %v169 = vpop.f32.mrb[0].mxu0
    %170 = vmatprep.mubr.bf16.mxu0 0
    %171 = vmatmul.mubr.bf16.gmra.mrb[0].mxu0 %v95
    %v172 = vpop.f32.mrb[0].mxu0
    %v173 = vadd.f32 %v73, %v172
    %v174 = vpop.f32.mrb[0].mxu0
    %v175 = vpop.f32.mrb[0].mxu0
    %v176 = vadd.f32 %v73, %v175
    %v177 = vpop.f32.mrb[0].mxu0
    %178 = vmatprep.mubr.bf16.mxu0 0
    %179 = vmatmul.mubr.bf16.gmra.mrb[0].mxu0 %v98
    %v180 = vpop.f32.mrb[0].mxu0
    %v181 = vadd.f32 %v73, %v180
    %v182 = vpop.f32.mrb[0].mxu0
    %v183 = vpop.f32.mrb[0].mxu0
    %v184 = vadd.f32 %v73, %v183
    %v185 = vpop.f32.mrb[0].mxu0
    %186 = vmatprep.mubr.bf16.mxu0 0
    %187 = vmatmul.mubr.bf16.gmra.mrb[0].mxu0 %v101
    %v188 = vpop.f32.mrb[0].mxu0
    %v189 = vadd.f32 %v73, %v188
    %v190 = vpop.f32.mrb[0].mxu0
    %v191 = vpop.f32.mrb[0].mxu0
    %v192 = vadd.f32 %v73, %v191
    %v193 = vpop.f32.mrb[0].mxu0
    %194 = vmatprep.mubr.bf16.mxu0 0
    %195 = vmatmul.mubr.bf16.gmra.mrb[0].mxu0 %v104
    %v196 = vpop.f32.mrb[0].mxu0
    %v197 = vadd.f32 %v73, %v196
    %v198 = vpop.f32.mrb[0].mxu0
    %v199 = vpop.f32.mrb[0].mxu0
    %v200 = vadd.f32 %v73, %v199
    %v201 = vpop.f32.mrb[0].mxu0
    %202 = vdwg.mxu0
    %v203 = vmax.f32 %v141, 0.0
    %v204 = vmax.f32 %v144, 0.0
    %v205 = vmax.f32 %v149, 0.0
    %v206 = vmax.f32 %v152, 0.0
    %v207 = vmax.f32 %v157, 0.0
    %v208 = vmax.f32 %v160, 0.0
    %v209 = vmax.f32 %v165, 0.0
    %v210 = vmax.f32 %v168, 0.0
    %v211 = vmax.f32 %v173, 0.0
    %v212 = vmax.f32 %v176, 0.0
    %v213 = vmax.f32 %v181, 0.0
    %v214 = vmax.f32 %v184, 0.0
    %v215 = vmax.f32 %v189, 0.0
    %v216 = vmax.f32 %v192, 0.0
    %v217 = vmax.f32 %v197, 0.0
    %v218 = vmax.f32 %v200, 0.0
    %v219 = vmin.f32 %v203, 6.0
    %v220 = vmin.f32 %v204, 6.0
    %v221 = vmin.f32 %v205, 6.0
    %v222 = vmin.f32 %v206, 6.0
    %v223 = vmin.f32 %v207, 6.0
    %v224 = vmin.f32 %v208, 6.0
    %v225 = vmin.f32 %v209, 6.0
    %v226 = vmin.f32 %v210, 6.0
    %v227 = vmin.f32 %v211, 6.0
    %v228 = vmin.f32 %v212, 6.0
    %v229 = vmin.f32 %v213, 6.0
    %v230 = vmin.f32 %v214, 6.0
    %v231 = vmin.f32 %v215, 6.0
    %v232 = vmin.f32 %v216, 6.0
    %v233 = vmin.f32 %v217, 6.0
    %v234 = vmin.f32 %v218, 6.0
    %vm235 = vcmask 261120
    %236 = vst.msk [vmem:[#allocation2 + $0x7] sm:$0xff] %vm235, 0.0
    %vm237 = vcmask 254976
    %238 = vst.msk [vmem:[#allocation2 + $0xf] sm:$0x3] %vm237, 0.0
    %239 = vst.msk [vmem:[#allocation2 + $0xf7] sm:$0xff] %vm235, 0.0
    %240 = vst.msk [vmem:[#allocation2 + $0xff] sm:$0x3] %vm237, 0.0
    %s241 = scalar_lea.vmem [#allocation2], 216
    %242 = vst.msk [vmem:[%s241 + $0x7] sm:$0xff] %vm235, 0.0
    %243 = vst.msk [vmem:[%s241 + $0xf] sm:$0x3] %vm237, 0.0
    %244 = vst.msk [vmem:[%s241 + $0xf7] sm:$0xff] %vm235, 0.0
    %245 = vst.msk [vmem:[%s241 + $0xff] sm:$0x3] %vm237, 0.0
    %s246 = scalar_lea.vmem [#allocation2], 24
    %vm247 = vcmask 253952
    %248 = vst.msk [vmem:[%s246 + $0x7] sm:$0x1] %vm247, 0.0
    %249 = vst.msk [vmem:[%s246 + $0x1f] sm:$0x1] %vm247, 0.0
    %250 = vst.msk [vmem:[%s246 + $0x37] sm:$0x1] %vm247, 0.0
    %251 = vst.msk [vmem:[%s246 + $0x4f] sm:$0x1] %vm247, 0.0
    %252 = vst.msk [vmem:[%s246 + $0x67] sm:$0x1] %vm247, 0.0
    %253 = vst.msk [vmem:[%s246 + $0x7f] sm:$0x1] %vm247, 0.0
    %254 = vst.msk [vmem:[%s246 + $0x97] sm:$0x1] %vm247, 0.0
    %255 = vst.msk [vmem:[%s246 + $0xaf] sm:$0x1] %vm247, 0.0
    %256 = vst.msk [vmem:[%s246 + $0xf7] sm:$0x1] %vm247, 0.0
    %257 = vst.msk [vmem:[%s246 + $0x10f] sm:$0x1] %vm247, 0.0
    %258 = vst.msk [vmem:[%s246 + $0x127] sm:$0x1] %vm247, 0.0
    %259 = vst.msk [vmem:[%s246 + $0x13f] sm:$0x1] %vm247, 0.0
    %260 = vst.msk [vmem:[%s246 + $0x157] sm:$0x1] %vm247, 0.0
    %261 = vst.msk [vmem:[%s246 + $0x16f] sm:$0x1] %vm247, 0.0
    %262 = vst.msk [vmem:[%s246 + $0x187] sm:$0x1] %vm247, 0.0
    %263 = vst.msk [vmem:[%s246 + $0x19f] sm:$0x1] %vm247, 0.0
    %264 = vst.msk [vmem:[%s246 + $0x10] sm:$0x1] %vm247, 0.0
    %265 = vst.msk [vmem:[%s246 + $0x28] sm:$0x1] %vm247, 0.0
    %266 = vst.msk [vmem:[%s246 + $0x40] sm:$0x1] %vm247, 0.0
    %267 = vst.msk [vmem:[%s246 + $0x58] sm:$0x1] %vm247, 0.0
    %268 = vst.msk [vmem:[%s246 + $0x70] sm:$0x1] %vm247, 0.0
    %269 = vst.msk [vmem:[%s246 + $0x88] sm:$0x1] %vm247, 0.0
    %270 = vst.msk [vmem:[%s246 + $0xa0] sm:$0x1] %vm247, 0.0
    %271 = vst.msk [vmem:[%s246 + $0xb8] sm:$0x1] %vm247, 0.0
    %272 = vst.msk [vmem:[%s246 + $0x100] sm:$0x1] %vm247, 0.0
    %273 = vst.msk [vmem:[%s246 + $0x118] sm:$0x1] %vm247, 0.0
    %274 = vst.msk [vmem:[%s246 + $0x130] sm:$0x1] %vm247, 0.0
    %275 = vst.msk [vmem:[%s246 + $0x148] sm:$0x1] %vm247, 0.0
    %276 = vst.msk [vmem:[%s246 + $0x160] sm:$0x1] %vm247, 0.0
    %277 = vst.msk [vmem:[%s246 + $0x178] sm:$0x1] %vm247, 0.0
    %278 = vst.msk [vmem:[%s246 + $0x190] sm:$0x1] %vm247, 0.0
    %279 = vst.msk [vmem:[%s246 + $0x1a8] sm:$0x1] %vm247, 0.0
    %280 = vst.msk [vmem:[%s246 + $0x8] sm:$0xff] %vm235, %v219
    %281 = vst.msk [vmem:[%s246 + $0x20] sm:$0xff] %vm235, %v220
    %282 = vst.msk [vmem:[%s246 + $0x38] sm:$0xff] %vm235, %v221
    %283 = vst.msk [vmem:[%s246 + $0x50] sm:$0xff] %vm235, %v222
    %284 = vst.msk [vmem:[%s246 + $0x68] sm:$0xff] %vm235, %v223
    %285 = vst.msk [vmem:[%s246 + $0x80] sm:$0xff] %vm235, %v224
    %286 = vst.msk [vmem:[%s246 + $0x98] sm:$0xff] %vm235, %v225
    %287 = vst.msk [vmem:[%s246 + $0xb0] sm:$0xff] %vm235, %v226
    %288 = vst.msk [vmem:[%s246 + $0xf8] sm:$0xff] %vm235, %v227
    %289 = vst.msk [vmem:[%s246 + $0x110] sm:$0xff] %vm235, %v228
    %290 = vst.msk [vmem:[%s246 + $0x128] sm:$0xff] %vm235, %v229
    %291 = vst.msk [vmem:[%s246 + $0x140] sm:$0xff] %vm235, %v230
    %292 = vst.msk [vmem:[%s246 + $0x158] sm:$0xff] %vm235, %v231
    %293 = vst.msk [vmem:[%s246 + $0x170] sm:$0xff] %vm235, %v232
    %294 = vst.msk [vmem:[%s246 + $0x188] sm:$0xff] %vm235, %v233
    %295 = vst.msk [vmem:[%s246 + $0x1a0] sm:$0xff] %vm235, %v234
    %v296 = vld [vmem:[%s3] sm:$0xff]
    %v297 = vld [vmem:[%s3 + $0x8] sm:$0x1]
    %v298 = vld [vmem:[#allocation2 + $0x7] sm:$0xff]
    %v299 = vld [vmem:[#allocation2 + $0x1f] sm:$0xff]
    %v300 = vld [vmem:[#allocation2 + $0x37] sm:$0xff]
    %v301 = vld [vmem:[#allocation2 + $0x4f] sm:$0xff]
    %v302 = vld [vmem:[#allocation2 + $0x67] sm:$0xff]
    %v303 = vld [vmem:[#allocation2 + $0x7f] sm:$0xff]
    %v304 = vld [vmem:[#allocation2 + $0x97] sm:$0xff]
    %v305 = vld [vmem:[#allocation2 + $0xaf] sm:$0xff]
    %v306 = vld [vmem:[#allocation2 + $0xf7] sm:$0xff]
    %v307 = vld [vmem:[#allocation2 + $0x10f] sm:$0xff]
    %v308 = vld [vmem:[#allocation2 + $0x127] sm:$0xff]
    %v309 = vld [vmem:[#allocation2 + $0x13f] sm:$0xff]
    %v310 = vld [vmem:[#allocation2 + $0x157] sm:$0xff]
    %v311 = vld [vmem:[#allocation2 + $0x16f] sm:$0xff]
    %v312 = vld [vmem:[#allocation2 + $0x187] sm:$0xff]
    %v313 = vld [vmem:[#allocation2 + $0x19f] sm:$0xff]
    %v314 = vlaneseq
    %v315 = vshrl.u32 %v314, 7
    %v316 = vsub.s32 0, %v315
    %v317 = vrot.slane %v296, %v316
    %v318 = vmul.f32 %v298, %v317
    %v319 = vmul.f32 %v299, %v317
    %v320 = vmul.f32 %v300, %v317
    %v321 = vmul.f32 %v301, %v317
    %v322 = vmul.f32 %v302, %v317
    %v323 = vmul.f32 %v303, %v317
    %v324 = vmul.f32 %v304, %v317
    %v325 = vmul.f32 %v305, %v317
    %v326 = vmul.f32 %v306, %v317
    %v327 = vmul.f32 %v307, %v317
    %v328 = vmul.f32 %v308, %v317
    %v329 = vmul.f32 %v309, %v317
    %v330 = vmul.f32 %v310, %v317
    %v331 = vmul.f32 %v311, %v317
    %v332 = vmul.f32 %v312, %v317
    %v333 = vmul.f32 %v313, %v317
    %v334 = vld [vmem:[#allocation2 + $0x8] sm:$0xff]
    %v335 = vld [vmem:[#allocation2 + $0x20] sm:$0xff]
    %v336 = vld [vmem:[#allocation2 + $0x38] sm:$0xff]
    %v337 = vld [vmem:[#allocation2 + $0x50] sm:$0xff]
    %v338 = vld [vmem:[#allocation2 + $0x68] sm:$0xff]
    %v339 = vld [vmem:[#allocation2 + $0x80] sm:$0xff]
    %v340 = vld [vmem:[#allocation2 + $0x98] sm:$0xff]
    %v341 = vld [vmem:[#allocation2 + $0xb0] sm:$0xff]
    %v342 = vld [vmem:[#allocation2 + $0xf8] sm:$0xff]
    %v343 = vld [vmem:[#allocation2 + $0x110] sm:$0xff]
    %v344 = vld [vmem:[#allocation2 + $0x128] sm:$0xff]
    %v345 = vld [vmem:[#allocation2 + $0x140] sm:$0xff]
    %v346 = vld [vmem:[#allocation2 + $0x158] sm:$0xff]
    %v347 = vld [vmem:[#allocation2 + $0x170] sm:$0xff]
    %v348 = vld [vmem:[#allocation2 + $0x188] sm:$0xff]
    %v349 = vld [vmem:[#allocation2 + $0x1a0] sm:$0xff]
    %v350 = vlaneseq
    %v351 = vshrl.u32 %v350, 7
    %v352 = vsub.s32 1, %v351
    %v353 = vrot.slane %v296, %v352
    %v354 = vmul.f32 %v334, %v353
    %v355 = vmul.f32 %v335, %v353
    %v356 = vmul.f32 %v336, %v353
    %v357 = vmul.f32 %v337, %v353
    %v358 = vmul.f32 %v338, %v353
    %v359 = vmul.f32 %v339, %v353
    %v360 = vmul.f32 %v340, %v353
    %v361 = vmul.f32 %v341, %v353
    %v362 = vmul.f32 %v342, %v353
    %v363 = vmul.f32 %v343, %v353
    %v364 = vmul.f32 %v344, %v353
    %v365 = vmul.f32 %v345, %v353
    %v366 = vmul.f32 %v346, %v353
    %v367 = vmul.f32 %v347, %v353
    %v368 = vmul.f32 %v348, %v353
    %v369 = vmul.f32 %v349, %v353
    %v370 = vadd.f32 %v318, %v354
    %v371 = vadd.f32 %v319, %v355
    %v372 = vadd.f32 %v320, %v356
    %v373 = vadd.f32 %v321, %v357
    %v374 = vadd.f32 %v322, %v358
    %v375 = vadd.f32 %v323, %v359
    %v376 = vadd.f32 %v324, %v360
    %v377 = vadd.f32 %v325, %v361
    %v378 = vadd.f32 %v326, %v362
    %v379 = vadd.f32 %v327, %v363
    %v380 = vadd.f32 %v328, %v364
    %v381 = vadd.f32 %v329, %v365
    %v382 = vadd.f32 %v330, %v366
    %v383 = vadd.f32 %v331, %v367
    %v384 = vadd.f32 %v332, %v368
    %v385 = vadd.f32 %v333, %v369
    %v386 = vld [vmem:[#allocation2 + $0x9] sm:$0xff]
    %v387 = vld [vmem:[#allocation2 + $0x21] sm:$0xff]
    %v388 = vld [vmem:[#allocation2 + $0x39] sm:$0xff]
    %v389 = vld [vmem:[#allocation2 + $0x51] sm:$0xff]
    %v390 = vld [vmem:[#allocation2 + $0x69] sm:$0xff]
    %v391 = vld [vmem:[#allocation2 + $0x81] sm:$0xff]
    %v392 = vld [vmem:[#allocation2 + $0x99] sm:$0xff]
    %v393 = vld [vmem:[#allocation2 + $0xb1] sm:$0xff]
    %v394 = vld [vmem:[#allocation2 + $0xf9] sm:$0xff]
    %v395 = vld [vmem:[#allocation2 + $0x111] sm:$0xff]
    %v396 = vld [vmem:[#allocation2 + $0x129] sm:$0xff]
    %v397 = vld [vmem:[#allocation2 + $0x141] sm:$0xff]
    %v398 = vld [vmem:[#allocation2 + $0x159] sm:$0xff]
    %v399 = vld [vmem:[#allocation2 + $0x171] sm:$0xff]
    %v400 = vld [vmem:[#allocation2 + $0x189] sm:$0xff]
    %v401 = vld [vmem:[#allocation2 + $0x1a1] sm:$0xff]
    %v402 = vlaneseq
    %v403 = vshrl.u32 %v402, 7
    %v404 = vsub.s32 2, %v403
    %v405 = vrot.slane %v296, %v404
    %v406 = vmul.f32 %v386, %v405
    %v407 = vmul.f32 %v387, %v405
    %v408 = vmul.f32 %v388, %v405
    %v409 = vmul.f32 %v389, %v405
    %v410 = vmul.f32 %v390, %v405
    %v411 = vmul.f32 %v391, %v405
    %v412 = vmul.f32 %v392, %v405
    %v413 = vmul.f32 %v393, %v405
    %v414 = vmul.f32 %v394, %v405
    %v415 = vmul.f32 %v395, %v405
    %v416 = vmul.f32 %v396, %v405
    %v417 = vmul.f32 %v397, %v405
    %v418 = vmul.f32 %v398, %v405
    %v419 = vmul.f32 %v399, %v405
    %v420 = vmul.f32 %v400, %v405
    %v421 = vmul.f32 %v401, %v405
    %v422 = vadd.f32 %v370, %v406
    %v423 = vadd.f32 %v371, %v407
    %v424 = vadd.f32 %v372, %v408
    %v425 = vadd.f32 %v373, %v409
    %v426 = vadd.f32 %v374, %v410
    %v427 = vadd.f32 %v375, %v411
    %v428 = vadd.f32 %v376, %v412
    %v429 = vadd.f32 %v377, %v413
    %v430 = vadd.f32 %v378, %v414
    %v431 = vadd.f32 %v379, %v415
    %v432 = vadd.f32 %v380, %v416
    %v433 = vadd.f32 %v381, %v417
    %v434 = vadd.f32 %v382, %v418
    %v435 = vadd.f32 %v383, %v419
    %v436 = vadd.f32 %v384, %v420
    %v437 = vadd.f32 %v385, %v421
    %v438 = vld [vmem:[%s246 + $0x7] sm:$0xff]
    %v439 = vld [vmem:[%s246 + $0x1f] sm:$0xff]
    %v440 = vld [vmem:[%s246 + $0x37] sm:$0xff]
    %v441 = vld [vmem:[%s246 + $0x4f] sm:$0xff]
    %v442 = vld [vmem:[%s246 + $0x67] sm:$0xff]
    %v443 = vld [vmem:[%s246 + $0x7f] sm:$0xff]
    %v444 = vld [vmem:[%s246 + $0x97] sm:$0xff]
    %v445 = vld [vmem:[%s246 + $0xaf] sm:$0xff]
    %v446 = vld [vmem:[%s246 + $0xf7] sm:$0xff]
    %v447 = vld [vmem:[%s246 + $0x10f] sm:$0xff]
    %v448 = vld [vmem:[%s246 + $0x127] sm:$0xff]
    %v449 = vld [vmem:[%s246 + $0x13f] sm:$0xff]
    %v450 = vld [vmem:[%s246 + $0x157] sm:$0xff]
    %v451 = vld [vmem:[%s246 + $0x16f] sm:$0xff]
    %v452 = vld [vmem:[%s246 + $0x187] sm:$0xff]
    %v453 = vld [vmem:[%s246 + $0x19f] sm:$0xff]
    %v454 = vlaneseq
    %v455 = vshrl.u32 %v454, 7
    %v456 = vsub.s32 3, %v455
    %v457 = vrot.slane %v296, %v456
    %v458 = vmul.f32 %v438, %v457
    %v459 = vmul.f32 %v439, %v457
    %v460 = vmul.f32 %v440, %v457
    %v461 = vmul.f32 %v441, %v457
    %v462 = vmul.f32 %v442, %v457
    %v463 = vmul.f32 %v443, %v457
    %v464 = vmul.f32 %v444, %v457
    %v465 = vmul.f32 %v445, %v457
    %v466 = vmul.f32 %v446, %v457
    %v467 = vmul.f32 %v447, %v457
    %v468 = vmul.f32 %v448, %v457
    %v469 = vmul.f32 %v449, %v457
    %v470 = vmul.f32 %v450, %v457
    %v471 = vmul.f32 %v451, %v457
    %v472 = vmul.f32 %v452, %v457
    %v473 = vmul.f32 %v453, %v457
    %v474 = vadd.f32 %v422, %v458
    %v475 = vadd.f32 %v423, %v459
    %v476 = vadd.f32 %v424, %v460
    %v477 = vadd.f32 %v425, %v461
    %v478 = vadd.f32 %v426, %v462
    %v479 = vadd.f32 %v427, %v463
    %v480 = vadd.f32 %v428, %v464
    %v481 = vadd.f32 %v429, %v465
    %v482 = vadd.f32 %v430, %v466
    %v483 = vadd.f32 %v431, %v467
    %v484 = vadd.f32 %v432, %v468
    %v485 = vadd.f32 %v433, %v469
    %v486 = vadd.f32 %v434, %v470
    %v487 = vadd.f32 %v435, %v471
    %v488 = vadd.f32 %v436, %v472
    %v489 = vadd.f32 %v437, %v473
    %v490 = vld [vmem:[%s246 + $0x8] sm:$0xff]
    %v491 = vld [vmem:[%s246 + $0x20] sm:$0xff]
    %v492 = vld [vmem:[%s246 + $0x38] sm:$0xff]
    %v493 = vld [vmem:[%s246 + $0x50] sm:$0xff]
    %v494 = vld [vmem:[%s246 + $0x68] sm:$0xff]
    %v495 = vld [vmem:[%s246 + $0x80] sm:$0xff]
    %v496 = vld [vmem:[%s246 + $0x98] sm:$0xff]
    %v497 = vld [vmem:[%s246 + $0xb0] sm:$0xff]
    %v498 = vld [vmem:[%s246 + $0xf8] sm:$0xff]
    %v499 = vld [vmem:[%s246 + $0x110] sm:$0xff]
    %v500 = vld [vmem:[%s246 + $0x128] sm:$0xff]
    %v501 = vld [vmem:[%s246 + $0x140] sm:$0xff]
    %v502 = vld [vmem:[%s246 + $0x158] sm:$0xff]
    %v503 = vld [vmem:[%s246 + $0x170] sm:$0xff]
    %v504 = vld [vmem:[%s246 + $0x188] sm:$0xff]
    %v505 = vld [vmem:[%s246 + $0x1a0] sm:$0xff]
    %v506 = vlaneseq
    %v507 = vshrl.u32 %v506, 7
    %v508 = vsub.s32 4, %v507
    %v509 = vrot.slane %v296, %v508
    %v510 = vmul.f32 %v490, %v509
    %v511 = vmul.f32 %v491, %v509
    %v512 = vmul.f32 %v492, %v509
    %v513 = vmul.f32 %v493, %v509
    %v514 = vmul.f32 %v494, %v509
    %v515 = vmul.f32 %v495, %v509
    %v516 = vmul.f32 %v496, %v509
    %v517 = vmul.f32 %v497, %v509
    %v518 = vmul.f32 %v498, %v509
    %v519 = vmul.f32 %v499, %v509
    %v520 = vmul.f32 %v500, %v509
    %v521 = vmul.f32 %v501, %v509
    %v522 = vmul.f32 %v502, %v509
    %v523 = vmul.f32 %v503, %v509
    %v524 = vmul.f32 %v504, %v509
    %v525 = vmul.f32 %v505, %v509
    %v526 = vadd.f32 %v474, %v510
    %v527 = vadd.f32 %v475, %v511
    %v528 = vadd.f32 %v476, %v512
    %v529 = vadd.f32 %v477, %v513
    %v530 = vadd.f32 %v478, %v514
    %v531 = vadd.f32 %v479, %v515
    %v532 = vadd.f32 %v480, %v516
    %v533 = vadd.f32 %v481, %v517
    %v534 = vadd.f32 %v482, %v518
    %v535 = vadd.f32 %v483, %v519
    %v536 = vadd.f32 %v484, %v520
    %v537 = vadd.f32 %v485, %v521
    %v538 = vadd.f32 %v486, %v522
    %v539 = vadd.f32 %v487, %v523
    %v540 = vadd.f32 %v488, %v524
    %v541 = vadd.f32 %v489, %v525
    %v542 = vld [vmem:[%s246 + $0x9] sm:$0xff]
    %v543 = vld [vmem:[%s246 + $0x21] sm:$0xff]
    %v544 = vld [vmem:[%s246 + $0x39] sm:$0xff]
    %v545 = vld [vmem:[%s246 + $0x51] sm:$0xff]
    %v546 = vld [vmem:[%s246 + $0x69] sm:$0xff]
    %v547 = vld [vmem:[%s246 + $0x81] sm:$0xff]
    %v548 = vld [vmem:[%s246 + $0x99] sm:$0xff]
    %v549 = vld [vmem:[%s246 + $0xb1] sm:$0xff]
    %v550 = vld [vmem:[%s246 + $0xf9] sm:$0xff]
    %v551 = vld [vmem:[%s246 + $0x111] sm:$0xff]
    %v552 = vld [vmem:[%s246 + $0x129] sm:$0xff]
    %v553 = vld [vmem:[%s246 + $0x141] sm:$0xff]
    %v554 = vld [vmem:[%s246 + $0x159] sm:$0xff]
    %v555 = vld [vmem:[%s246 + $0x171] sm:$0xff]
    %v556 = vld [vmem:[%s246 + $0x189] sm:$0xff]
    %v557 = vld [vmem:[%s246 + $0x1a1] sm:$0xff]
    %v558 = vlaneseq
    %v559 = vshrl.u32 %v558, 7
    %v560 = vsub.s32 5, %v559
    %v561 = vrot.slane %v296, %v560
    %v562 = vmul.f32 %v542, %v561
    %v563 = vmul.f32 %v543, %v561
    %v564 = vmul.f32 %v544, %v561
    %v565 = vmul.f32 %v545, %v561
    %v566 = vmul.f32 %v546, %v561
    %v567 = vmul.f32 %v547, %v561
    %v568 = vmul.f32 %v548, %v561
    %v569 = vmul.f32 %v549, %v561
    %v570 = vmul.f32 %v550, %v561
    %v571 = vmul.f32 %v551, %v561
    %v572 = vmul.f32 %v552, %v561
    %v573 = vmul.f32 %v553, %v561
    %v574 = vmul.f32 %v554, %v561
    %v575 = vmul.f32 %v555, %v561
    %v576 = vmul.f32 %v556, %v561
    %v577 = vmul.f32 %v557, %v561
    %v578 = vadd.f32 %v526, %v562
    %v579 = vadd.f32 %v527, %v563
    %v580 = vadd.f32 %v528, %v564
    %v581 = vadd.f32 %v529, %v565
    %v582 = vadd.f32 %v530, %v566
    %v583 = vadd.f32 %v531, %v567
    %v584 = vadd.f32 %v532, %v568
    %v585 = vadd.f32 %v533, %v569
    %v586 = vadd.f32 %v534, %v570
    %v587 = vadd.f32 %v535, %v571
    %v588 = vadd.f32 %v536, %v572
    %v589 = vadd.f32 %v537, %v573
    %v590 = vadd.f32 %v538, %v574
    %v591 = vadd.f32 %v539, %v575
    %v592 = vadd.f32 %v540, %v576
    %v593 = vadd.f32 %v541, %v577
    %s594 = scalar_lea.vmem [#allocation2], 48
    %v595 = vld [vmem:[%s594 + $0x7] sm:$0xff]
    %v596 = vld [vmem:[%s594 + $0x1f] sm:$0xff]
    %v597 = vld [vmem:[%s594 + $0x37] sm:$0xff]
    %v598 = vld [vmem:[%s594 + $0x4f] sm:$0xff]
    %v599 = vld [vmem:[%s594 + $0x67] sm:$0xff]
    %v600 = vld [vmem:[%s594 + $0x7f] sm:$0xff]
    %v601 = vld [vmem:[%s594 + $0x97] sm:$0xff]
    %v602 = vld [vmem:[%s594 + $0xaf] sm:$0xff]
    %v603 = vld [vmem:[%s594 + $0xf7] sm:$0xff]
    %v604 = vld [vmem:[%s594 + $0x10f] sm:$0xff]
    %v605 = vld [vmem:[%s594 + $0x127] sm:$0xff]
    %v606 = vld [vmem:[%s594 + $0x13f] sm:$0xff]
    %v607 = vld [vmem:[%s594 + $0x157] sm:$0xff]
    %v608 = vld [vmem:[%s594 + $0x16f] sm:$0xff]
    %v609 = vld [vmem:[%s594 + $0x187] sm:$0xff]
    %v610 = vld [vmem:[%s594 + $0x19f] sm:$0xff]
    %v611 = vlaneseq
    %v612 = vshrl.u32 %v611, 7
    %v613 = vsub.s32 6, %v612
    %v614 = vrot.slane %v296, %v613
    %v615 = vmul.f32 %v595, %v614
    %v616 = vmul.f32 %v596, %v614
    %v617 = vmul.f32 %v597, %v614
    %v618 = vmul.f32 %v598, %v614
    %v619 = vmul.f32 %v599, %v614
    %v620 = vmul.f32 %v600, %v614
    %v621 = vmul.f32 %v601, %v614
    %v622 = vmul.f32 %v602, %v614
    %v623 = vmul.f32 %v603, %v614
    %v624 = vmul.f32 %v604, %v614
    %v625 = vmul.f32 %v605, %v614
    %v626 = vmul.f32 %v606, %v614
    %v627 = vmul.f32 %v607, %v614
    %v628 = vmul.f32 %v608, %v614
    %v629 = vmul.f32 %v609, %v614
    %v630 = vmul.f32 %v610, %v614
    %v631 = vadd.f32 %v578, %v615
    %v632 = vadd.f32 %v579, %v616
    %v633 = vadd.f32 %v580, %v617
    %v634 = vadd.f32 %v581, %v618
    %v635 = vadd.f32 %v582, %v619
    %v636 = vadd.f32 %v583, %v620
    %v637 = vadd.f32 %v584, %v621
    %v638 = vadd.f32 %v585, %v622
    %v639 = vadd.f32 %v586, %v623
    %v640 = vadd.f32 %v587, %v624
    %v641 = vadd.f32 %v588, %v625
    %v642 = vadd.f32 %v589, %v626
    %v643 = vadd.f32 %v590, %v627
    %v644 = vadd.f32 %v591, %v628
    %v645 = vadd.f32 %v592, %v629
    %v646 = vadd.f32 %v593, %v630
    %v647 = vld [vmem:[%s594 + $0x8] sm:$0xff]
    %v648 = vld [vmem:[%s594 + $0x20] sm:$0xff]
    %v649 = vld [vmem:[%s594 + $0x38] sm:$0xff]
    %v650 = vld [vmem:[%s594 + $0x50] sm:$0xff]
    %v651 = vld [vmem:[%s594 + $0x68] sm:$0xff]
    %v652 = vld [vmem:[%s594 + $0x80] sm:$0xff]
    %v653 = vld [vmem:[%s594 + $0x98] sm:$0xff]
    %v654 = vld [vmem:[%s594 + $0xb0] sm:$0xff]
    %v655 = vld [vmem:[%s594 + $0xf8] sm:$0xff]
    %v656 = vld [vmem:[%s594 + $0x110] sm:$0xff]
    %v657 = vld [vmem:[%s594 + $0x128] sm:$0xff]
    %v658 = vld [vmem:[%s594 + $0x140] sm:$0xff]
    %v659 = vld [vmem:[%s594 + $0x158] sm:$0xff]
    %v660 = vld [vmem:[%s594 + $0x170] sm:$0xff]
    %v661 = vld [vmem:[%s594 + $0x188] sm:$0xff]
    %v662 = vld [vmem:[%s594 + $0x1a0] sm:$0xff]
    %v663 = vlaneseq
    %v664 = vshrl.u32 %v663, 7
    %v665 = vsub.s32 7, %v664
    %v666 = vrot.slane %v296, %v665
    %v667 = vmul.f32 %v647, %v666
    %v668 = vmul.f32 %v648, %v666
    %v669 = vmul.f32 %v649, %v666
    %v670 = vmul.f32 %v650, %v666
    %v671 = vmul.f32 %v651, %v666
    %v672 = vmul.f32 %v652, %v666
    %v673 = vmul.f32 %v653, %v666
    %v674 = vmul.f32 %v654, %v666
    %v675 = vmul.f32 %v655, %v666
    %v676 = vmul.f32 %v656, %v666
    %v677 = vmul.f32 %v657, %v666
    %v678 = vmul.f32 %v658, %v666
    %v679 = vmul.f32 %v659, %v666
    %v680 = vmul.f32 %v660, %v666
    %v681 = vmul.f32 %v661, %v666
    %v682 = vmul.f32 %v662, %v666
    %v683 = vadd.f32 %v631, %v667
    %v684 = vadd.f32 %v632, %v668
    %v685 = vadd.f32 %v633, %v669
    %v686 = vadd.f32 %v634, %v670
    %v687 = vadd.f32 %v635, %v671
    %v688 = vadd.f32 %v636, %v672
    %v689 = vadd.f32 %v637, %v673
    %v690 = vadd.f32 %v638, %v674
    %v691 = vadd.f32 %v639, %v675
    %v692 = vadd.f32 %v640, %v676
    %v693 = vadd.f32 %v641, %v677
    %v694 = vadd.f32 %v642, %v678
    %v695 = vadd.f32 %v643, %v679
    %v696 = vadd.f32 %v644, %v680
    %v697 = vadd.f32 %v645, %v681
    %v698 = vadd.f32 %v646, %v682
    %v699 = vld [vmem:[%s594 + $0x9] sm:$0xff]
    %v700 = vld [vmem:[%s594 + $0x21] sm:$0xff]
    %v701 = vld [vmem:[%s594 + $0x39] sm:$0xff]
    %v702 = vld [vmem:[%s594 + $0x51] sm:$0xff]
    %v703 = vld [vmem:[%s594 + $0x69] sm:$0xff]
    %v704 = vld [vmem:[%s594 + $0x81] sm:$0xff]
    %v705 = vld [vmem:[%s594 + $0x99] sm:$0xff]
    %v706 = vld [vmem:[%s594 + $0xb1] sm:$0xff]
    %v707 = vld [vmem:[%s594 + $0xf9] sm:$0xff]
    %v708 = vld [vmem:[%s594 + $0x111] sm:$0xff]
    %v709 = vld [vmem:[%s594 + $0x129] sm:$0xff]
    %v710 = vld [vmem:[%s594 + $0x141] sm:$0xff]
    %v711 = vld [vmem:[%s594 + $0x159] sm:$0xff]
    %v712 = vld [vmem:[%s594 + $0x171] sm:$0xff]
    %v713 = vld [vmem:[%s594 + $0x189] sm:$0xff]
    %v714 = vld [vmem:[%s594 + $0x1a1] sm:$0xff]
    %v715 = vlaneseq
    %v716 = vshrl.u32 %v715, 7
    %v717 = vsub.s32 0, %v716
    %v718 = vrot.slane %v297, %v717
    %v719 = vmul.f32 %v699, %v718
    %v720 = vmul.f32 %v700, %v718
    %v721 = vmul.f32 %v701, %v718
    %v722 = vmul.f32 %v702, %v718
    %v723 = vmul.f32 %v703, %v718
    %v724 = vmul.f32 %v704, %v718
    %v725 = vmul.f32 %v705, %v718
    %v726 = vmul.f32 %v706, %v718
    %v727 = vmul.f32 %v707, %v718
    %v728 = vmul.f32 %v708, %v718
    %v729 = vmul.f32 %v709, %v718
    %v730 = vmul.f32 %v710, %v718
    %v731 = vmul.f32 %v711, %v718
    %v732 = vmul.f32 %v712, %v718
    %v733 = vmul.f32 %v713, %v718
    %v734 = vmul.f32 %v714, %v718
    %v735 = vadd.f32 %v683, %v719
    %v736 = vadd.f32 %v684, %v720
    %v737 = vadd.f32 %v685, %v721
    %v738 = vadd.f32 %v686, %v722
    %v739 = vadd.f32 %v687, %v723
    %v740 = vadd.f32 %v688, %v724
    %v741 = vadd.f32 %v689, %v725
    %v742 = vadd.f32 %v690, %v726
    %v743 = vadd.f32 %v691, %v727
    %v744 = vadd.f32 %v692, %v728
    %v745 = vadd.f32 %v693, %v729
    %v746 = vadd.f32 %v694, %v730
    %v747 = vadd.f32 %v695, %v731
    %v748 = vadd.f32 %v696, %v732
    %v749 = vadd.f32 %v697, %v733
    %v750 = vadd.f32 %v698, %v734
    %v751 = vld [vmem:[%s4] sm:$0x1]
    %v753 = vlaneseq
    %v754 = vshrl.u32 %v753, 7
    %v755 = vsub.s32 0, %v754
    %v756 = vrot.slane %v751, %v755
    %v758 = vadd.f32 %v735, %v756
    %v759 = vadd.f32 %v736, %v756
    %v760 = vadd.f32 %v737, %v756
    %v761 = vadd.f32 %v738, %v756
    %v762 = vadd.f32 %v739, %v756
    %v763 = vadd.f32 %v740, %v756
    %v764 = vadd.f32 %v741, %v756
    %v765 = vadd.f32 %v742, %v756
    %v766 = vadd.f32 %v743, %v756
    %v767 = vadd.f32 %v744, %v756
    %v768 = vadd.f32 %v745, %v756
    %v769 = vadd.f32 %v746, %v756
    %v770 = vadd.f32 %v747, %v756
    %v771 = vadd.f32 %v748, %v756
    %v772 = vadd.f32 %v749, %v756
    %v773 = vadd.f32 %v750, %v756
    %v774 = vmax.f32 %v758, 0.0
    %v775 = vmax.f32 %v759, 0.0
    %v776 = vmax.f32 %v760, 0.0
    %v777 = vmax.f32 %v761, 0.0
    %v778 = vmax.f32 %v762, 0.0
    %v779 = vmax.f32 %v763, 0.0
    %v780 = vmax.f32 %v764, 0.0
    %v781 = vmax.f32 %v765, 0.0
    %v782 = vmax.f32 %v766, 0.0
    %v783 = vmax.f32 %v767, 0.0
    %v784 = vmax.f32 %v768, 0.0
    %v785 = vmax.f32 %v769, 0.0
    %v786 = vmax.f32 %v770, 0.0
    %v787 = vmax.f32 %v771, 0.0
    %v788 = vmax.f32 %v772, 0.0
    %v789 = vmax.f32 %v773, 0.0
    %v790 = vmin.f32 %v774, 6.0
    %v791 = vmin.f32 %v775, 6.0
    %v792 = vmin.f32 %v776, 6.0
    %v793 = vmin.f32 %v777, 6.0
    %v794 = vmin.f32 %v778, 6.0
    %v795 = vmin.f32 %v779, 6.0
    %v796 = vmin.f32 %v780, 6.0
    %v797 = vmin.f32 %v781, 6.0
    %v798 = vmin.f32 %v782, 6.0
    %v799 = vmin.f32 %v783, 6.0
    %v800 = vmin.f32 %v784, 6.0
    %v801 = vmin.f32 %v785, 6.0
    %v802 = vmin.f32 %v786, 6.0
    %v803 = vmin.f32 %v787, 6.0
    %v804 = vmin.f32 %v788, 6.0
    %v805 = vmin.f32 %v789, 6.0
    %v806 = vpack.c.bf16 %v791, %v790
    %v807 = vpack.c.bf16 %v793, %v792
    %v808 = vpack.c.bf16 %v795, %v794
    %v809 = vpack.c.bf16 %v797, %v796
    %v810 = vpack.c.bf16 %v799, %v798
    %v811 = vpack.c.bf16 %v801, %v800
    %v812 = vpack.c.bf16 %v803, %v802
    %v813 = vpack.c.bf16 %v805, %v804
    %v814 = vld [vmem:[%s5] sm:$0xf]
    %v815 = vld [vmem:[%s5 + $0x4] sm:$0xf]
    %v816 = vld [vmem:[%s5 + $0x8] sm:$0xf]
    %v817 = vld [vmem:[%s5 + $0xc] sm:$0xf]
    %v818 = vld [vmem:[%s6] sm:$0x1]
    %v820 = vlaneseq
    %v821 = vshrl.u32 %v820, 7
    %v822 = vsub.s32 0, %v821
    %v823 = vrot.slane %v818, %v822
    %v829 = vunpack.c.l.b16 %v814
    %v830 = vunpack.c.l.b16 %v815
    %v831 = vunpack.c.l.b16 %v816
    %v832 = vunpack.c.l.b16 %v817
    %v833 = vpack.c.b16 %v830, %v829
    %v834 = vpack.c.b16 %v832, %v831
    %v838 = vsel %vm235, %v806, 0
    %v841 = vsel %vm235, %v807, 0
    %v844 = vsel %vm235, %v808, 0
    %v847 = vsel %vm235, %v809, 0
    %v850 = vsel %vm235, %v810, 0
    %v853 = vsel %vm235, %v811, 0
    %v856 = vsel %vm235, %v812, 0
    %v859 = vsel %vm235, %v813, 0
    %861 = vmatprep.subr.bf16.mxu0 0
    %862 = vmatpush1.bf16.msra.mxu0 %v833
    %863 = vmatprep.subr.bf16.mxu0 0
    %864 = vmatpush1.bf16.msra.mxu0 %v834
    %865 = vmatprep.subr.bf16.mxu0 0
    %866 = vmatpush1.bf16.msra.mxu0 0
    %867 = vmatprep.subr.bf16.mxu0 0
    %868 = vmatpush1.bf16.msra.mxu0 0
    %869 = vmatprep.subr.bf16.mxu0 0
    %870 = vmatpush1.bf16.msra.mxu0 0
    %871 = vmatprep.subr.bf16.mxu0 0
    %872 = vmatpush1.bf16.msra.mxu0 0
    %873 = vmatprep.subr.bf16.mxu0 0
    %874 = vmatpush1.bf16.msra.mxu0 0
    %875 = vmatprep.subr.bf16.mxu0 0
    %876 = vmatpush1.bf16.msra.mxu0 0
    %877 = vmatprep.subr.bf16.mxu0 0
    %878 = vmatpush1.bf16.msra.mxu0 0
    %879 = vmatprep.subr.bf16.mxu0 0
    %880 = vmatpush1.bf16.msra.mxu0 0
    %881 = vmatprep.subr.bf16.mxu0 0
    %882 = vmatpush1.bf16.msra.mxu0 0
    %883 = vmatprep.subr.bf16.mxu0 0
    %884 = vmatpush1.bf16.msra.mxu0 0
    %885 = vmatprep.subr.bf16.mxu0 0
    %886 = vmatpush1.bf16.msra.mxu0 0
    %887 = vmatprep.subr.bf16.mxu0 0
    %888 = vmatpush1.bf16.msra.mxu0 0
    %889 = vmatprep.subr.bf16.mxu0 0
    %890 = vmatpush1.bf16.msra.mxu0 0
    %891 = vmatprep.subr.bf16.mxu0 0
    %892 = vmatpush1.bf16.msra.mxu0 0
    %893 = vmatprep.mubr.bf16.mxu0 0
    %894 = vmatmul.mubr.bf16.gmra.mrb[0].mxu0 %v838
    %v895 = vpop.f32.mrb[0].mxu0
    %v896 = vadd.f32 %v823, %v895
    %v897 = vpop.f32.mrb[0].mxu0
    %v898 = vpop.f32.mrb[0].mxu0
    %v899 = vadd.f32 %v823, %v898
    %v900 = vpop.f32.mrb[0].mxu0
    %901 = vmatprep.mubr.bf16.mxu0 0
    %902 = vmatmul.mubr.bf16.gmra.mrb[0].mxu0 %v841
    %v903 = vpop.f32.mrb[0].mxu0
    %v904 = vadd.f32 %v823, %v903
    %v905 = vpop.f32.mrb[0].mxu0
    %v906 = vpop.f32.mrb[0].mxu0
    %v907 = vadd.f32 %v823, %v906
    %v908 = vpop.f32.mrb[0].mxu0
    %909 = vmatprep.mubr.bf16.mxu0 0
    %910 = vmatmul.mubr.bf16.gmra.mrb[0].mxu0 %v844
    %v911 = vpop.f32.mrb[0].mxu0
    %v912 = vadd.f32 %v823, %v911
    %v913 = vpop.f32.mrb[0].mxu0
    %v914 = vpop.f32.mrb[0].mxu0
    %v915 = vadd.f32 %v823, %v914
    %v916 = vpop.f32.mrb[0].mxu0
    %917 = vmatprep.mubr.bf16.mxu0 0
    %918 = vmatmul.mubr.bf16.gmra.mrb[0].mxu0 %v847
    %v919 = vpop.f32.mrb[0].mxu0
    %v920 = vadd.f32 %v823, %v919
    %v921 = vpop.f32.mrb[0].mxu0
    %v922 = vpop.f32.mrb[0].mxu0
    %v923 = vadd.f32 %v823, %v922
    %v924 = vpop.f32.mrb[0].mxu0
    %925 = vmatprep.mubr.bf16.mxu0 0
    %926 = vmatmul.mubr.bf16.gmra.mrb[0].mxu0 %v850
    %v927 = vpop.f32.mrb[0].mxu0
    %v928 = vadd.f32 %v823, %v927
    %v929 = vpop.f32.mrb[0].mxu0
    %v930 = vpop.f32.mrb[0].mxu0
    %v931 = vadd.f32 %v823, %v930
    %v932 = vpop.f32.mrb[0].mxu0
    %933 = vmatprep.mubr.bf16.mxu0 0
    %934 = vmatmul.mubr.bf16.gmra.mrb[0].mxu0 %v853
    %v935 = vpop.f32.mrb[0].mxu0
    %v936 = vadd.f32 %v823, %v935
    %v937 = vpop.f32.mrb[0].mxu0
    %v938 = vpop.f32.mrb[0].mxu0
    %v939 = vadd.f32 %v823, %v938
    %v940 = vpop.f32.mrb[0].mxu0
    %941 = vmatprep.mubr.bf16.mxu0 0
    %942 = vmatmul.mubr.bf16.gmra.mrb[0].mxu0 %v856
    %v943 = vpop.f32.mrb[0].mxu0
    %v944 = vadd.f32 %v823, %v943
    %v945 = vpop.f32.mrb[0].mxu0
    %v946 = vpop.f32.mrb[0].mxu0
    %v947 = vadd.f32 %v823, %v946
    %v948 = vpop.f32.mrb[0].mxu0
    %949 = vmatprep.mubr.bf16.mxu0 0
    %950 = vmatmul.mubr.bf16.gmra.mrb[0].mxu0 %v859
    %v951 = vpop.f32.mrb[0].mxu0
    %v952 = vadd.f32 %v823, %v951
    %v953 = vpop.f32.mrb[0].mxu0
    %v954 = vpop.f32.mrb[0].mxu0
    %v955 = vadd.f32 %v823, %v954
    %v956 = vpop.f32.mrb[0].mxu0
    %957 = vdwg.mxu0
    %v958 = vadd.f32 %v896, %v42
    %v959 = vadd.f32 %v899, %v43
    %v960 = vadd.f32 %v904, %v44
    %v961 = vadd.f32 %v907, %v45
    %v962 = vadd.f32 %v912, %v46
    %v963 = vadd.f32 %v915, %v47
    %v964 = vadd.f32 %v920, %v48
    %v965 = vadd.f32 %v923, %v49
    %v966 = vadd.f32 %v928, %v50
    %v967 = vadd.f32 %v931, %v51
    %v968 = vadd.f32 %v936, %v52
    %v969 = vadd.f32 %v939, %v53
    %v970 = vadd.f32 %v944, %v54
    %v971 = vadd.f32 %v947, %v55
    %v972 = vadd.f32 %v952, %v56
    %v973 = vadd.f32 %v955, %v57
    %974 = vst.msk [vmem:[#allocation6] sm:$0xff] %vm81, %v958
    %975 = vst.msk [vmem:[#allocation6 + $0x8] sm:$0xff] %vm81, %v959
    %976 = vst.msk [vmem:[#allocation6 + $0x10] sm:$0xff] %vm81, %v960
    %977 = vst.msk [vmem:[#allocation6 + $0x18] sm:$0xff] %vm81, %v961
    %978 = vst.msk [vmem:[#allocation6 + $0x20] sm:$0xff] %vm81, %v962
    %979 = vst.msk [vmem:[#allocation6 + $0x28] sm:$0xff] %vm81, %v963
    %980 = vst.msk [vmem:[#allocation6 + $0x30] sm:$0xff] %vm81, %v964
    %981 = vst.msk [vmem:[#allocation6 + $0x38] sm:$0xff] %vm81, %v965
    %982 = vst.msk [vmem:[#allocation6 + $0x40] sm:$0xff] %vm81, %v966
    %983 = vst.msk [vmem:[#allocation6 + $0x48] sm:$0xff] %vm81, %v967
    %984 = vst.msk [vmem:[#allocation6 + $0x50] sm:$0xff] %vm81, %v968
    %985 = vst.msk [vmem:[#allocation6 + $0x58] sm:$0xff] %vm81, %v969
    %986 = vst.msk [vmem:[#allocation6 + $0x60] sm:$0xff] %vm81, %v970
    %987 = vst.msk [vmem:[#allocation6 + $0x68] sm:$0xff] %vm81, %v971
    %988 = vst.msk [vmem:[#allocation6 + $0x70] sm:$0xff] %vm81, %v972
    %989 = vst.msk [vmem:[#allocation6 + $0x78] sm:$0xff] %vm81, %v973
    // Predicated region
    $region34: #{tpu_custom_call.1} parent=1 // pred_check
      _
    $region35: #{tpu_custom_call.1} parent=1 // pred_check_branch
      %991 = sbr.rel (0) target = $region37
    $region36: #{tpu_custom_call.1} parent=1 // pred_region
      %s993 = ssub.s32 2048, 2048
      %994 = vsyncadd [#allocation5], %s993
      %s995 = sshll.u32 [#allocation6], 4
      %s996 = int_to_ptr.vmem [resolvable:$true] %s995
      %1001 = dma.vmem_to_hbm [thread:$0]  %s996, 2048, %s7, [#allocation5], 128, 128, 8
    $region37: #{tpu_custom_call.1} parent=1 // pred_fallthru
      _
    // Predicated region
    $region38: #{tpu_custom_call.1} parent=1 // pred_check
      _
    $region39: #{tpu_custom_call.1} parent=1 // pred_check_branch
      %1003 = sbr.rel (0) target = $region41
    $region40: #{tpu_custom_call.1} parent=1 // pred_region
      %1004 = dma.done [#allocation5], 2048
    $region41: #{tpu_custom_call.1} parent=1 // pred_fallthru
      _
    %1005 = vsyncpa [#allocation4], 1
    %1006 = vsyncpa [#allocation5], 1

</llo_original>
